<compile_context>
chip_gen: v7x
topology: tpu7x:2x2x1
jax: 0.10.0
libtpu: 0.0.40
codegen_flags: <defaults>
</compile_context>

<pallas_src>
import jax
import jax.numpy as jnp
from jax.experimental import pallas as pl
from jax.experimental.pallas import tpu as pltpu


_NSTATS = 8  # stats columns: 0=ce, 1=valid, 2=correct, 3=w*ce, 4=w, 5..7=pad


# ------------------------------------------------------------------ tile selection
def _pick_token_tile(n):
    for t in (512, 256, 128, 64, 32, 16, 8):
        if n % t == 0:
            return t
    return n


def _pick_vocab_tile(v, h, budget_bytes=8 * 1024 * 1024):
    """Largest 128-multiple vocab tile that divides V, keeps double/triple-buffered bf16
    weight tiles well inside VMEM (conservative for v7x's 64 MiB / 32 MiB scoped), and
    gives >= 2 vocab steps when possible so the weight-tile DMA pipelines behind the MXU."""
    best = None
    for t in (4096, 2048, 1024, 512, 256, 128):
        if v % t == 0 and 3 * t * h * 2 <= budget_bytes:
            if best is None:
                best = t
            if v // t >= 2:
                return t
    return best if best is not None else v


# ------------------------------------------------------------------ kernels
def _mlp_block_kernel(x_ref, w1_ref, w2_ref, o_ref):
    """Residual SiLU MLP on one token tile: o = x + silu(x @ w1) @ w2 (bf16 MXU, f32 SiLU)."""
    x = x_ref[...]                                                     # bf16 (tm, H)
    h = jnp.dot(x, w1_ref[...], preferred_element_type=jnp.float32)   # f32  (tm, F)
    h = h * jax.nn.sigmoid(h)                                          # SiLU in f32 (v5e-safe)
    y = jnp.dot(h.astype(jnp.bfloat16), w2_ref[...],
                preferred_element_type=jnp.float32)                    # f32  (tm, H)
    o_ref[...] = (x.astype(jnp.float32) + y).astype(o_ref.dtype)


def _head_ce_kernel(h_ref, w_ref, lab_ref, rw_ref, stats_ref,
                    m_sc, l_sc, ll_sc, bi_sc):
    """Fused tied lm_head + online-softmax cross-entropy + running argmax.

    Grid = (token_tiles, vocab_tiles); vocab is the trailing 'arbitrary' (reduction) axis.
    h:[tm,H] bf16, w:[tv,H] bf16, lab/rw:[tm,1].  Logits tiles live only in VMEM.
    """
    vi = pl.program_id(1)
    nv = pl.num_programs(1)
    tm, _ = h_ref.shape
    tv, _ = w_ref.shape

    @pl.when(vi == 0)
    def _init():
        m_sc[...] = jnp.full(m_sc.shape, -jnp.inf, m_sc.dtype)
        l_sc[...] = jnp.zeros(l_sc.shape, l_sc.dtype)
        ll_sc[...] = jnp.zeros(ll_sc.shape, ll_sc.dtype)
        bi_sc[...] = jnp.zeros(bi_sc.shape, bi_sc.dtype)

    labels = lab_ref[...]                                              # (tm, 1) int32

    # logits tile on the MXU: (tm, tv) f32 = h_bf16 @ W_emb_tile_bf16^T
    s = jax.lax.dot_general(
        h_ref[...], w_ref[...],
        dimension_numbers=(((1,), (1,)), ((), ())),
        preferred_element_type=jnp.float32)

    vocab_ids = vi * tv + jax.lax.broadcasted_iota(jnp.int32, (tm, tv), 1)
    eq = vocab_ids == labels                                           # single reused compare
    ll_sc[...] += jnp.sum(jnp.where(eq, s, 0.0), axis=-1, keepdims=True)

    # tile max / first-index tile argmax (global vocab ids)
    tile_max = jnp.max(s, axis=-1, keepdims=True)
    cand = jnp.where(s == tile_max, vocab_ids, jnp.int32(2 ** 30))
    tile_arg = jnp.min(cand, axis=-1, keepdims=True)

    m_old = m_sc[...]
    # strict > keeps the earliest (lowest-index) maximum -> matches torch/jnp argmax
    bi_sc[...] = jnp.where(tile_max > m_old, tile_arg, bi_sc[...])
    m_new = jnp.maximum(m_old, tile_max)
    l_sc[...] = l_sc[...] * jnp.exp(m_old - m_new) + jnp.sum(
        jnp.exp(s - m_new), axis=-1, keepdims=True)
    m_sc[...] = m_new

    @pl.when(vi == nv - 1)
    def _finalize():
        lse = m_sc[...] + jnp.log(l_sc[...])
        valid = labels != -100
        ce = jnp.where(valid, lse - ll_sc[...], 0.0)                   # ignore_index -> 0
        w = rw_ref[...]
        correct = jnp.logical_or(bi_sc[...] == labels, jnp.logical_not(valid))

        col = jax.lax.broadcasted_iota(jnp.int32, (tm, _NSTATS), 1)
        stats = jnp.where(col == 0, ce, 0.0)
        stats = jnp.where(col == 1, valid.astype(jnp.float32), stats)
        stats = jnp.where(col == 2, correct.astype(jnp.float32), stats)
        stats = jnp.where(col == 3, w * ce, stats)
        stats = jnp.where(col == 4, w, stats)
        stats_ref[...] = stats


# ------------------------------------------------------------------ wrappers
def mlp_block(x, w1, w2, *, tm=None):
    n, h = x.shape
    hh, f = w1.shape
    assert hh == h and w2.shape == (f, h)
    if tm is None:
        tm = _pick_token_tile(n)
    assert n % tm == 0
    return pl.pallas_call(
        _mlp_block_kernel,
        out_shape=jax.ShapeDtypeStruct((n, h), jnp.bfloat16),
        grid_spec=pltpu.PrefetchScalarGridSpec(
            num_scalar_prefetch=0,
            grid=(n // tm,),
            in_specs=[
                pl.BlockSpec((tm, h), lambda i: (i, 0)),
                pl.BlockSpec((h, f), lambda i: (0, 0)),
                pl.BlockSpec((f, h), lambda i: (0, 0)),
            ],
            out_specs=pl.BlockSpec((tm, h), lambda i: (i, 0)),
        ),
        compiler_params=pltpu.CompilerParams(dimension_semantics=("parallel",)),
    )(x, w1, w2)


def fused_head_ce(h, w_emb, shift_labels, shift_w, *, tm=None, tv=None):
    """Returns per-token stats [ce, valid, correct, w*ce, w, 0, 0, 0] without ever
    materializing the [N, V] logits in HBM."""
    n, hd = h.shape
    v, hd2 = w_emb.shape
    assert hd == hd2
    if tm is None:
        tm = _pick_token_tile(n)
    if tv is None:
        tv = _pick_vocab_tile(v, hd)
    assert n % tm == 0 and v % tv == 0
    nt, nv = n // tm, v // tv

    cost = pl.CostEstimate(
        flops=2 * n * v * hd,
        transcendentals=n * v + n,
        bytes_accessed=(n * hd * 2) + (nt * v * hd * 2) + (2 * n * 4) + (n * _NSTATS * 4),
    )

    return pl.pallas_call(
        _head_ce_kernel,
        out_shape=jax.ShapeDtypeStruct((n, _NSTATS), jnp.float32),
        grid_spec=pltpu.PrefetchScalarGridSpec(
            num_scalar_prefetch=0,
            grid=(nt, nv),
            in_specs=[
                pl.BlockSpec((tm, hd), lambda ti, vi: (ti, 0)),   # hidden tile (resident)
                pl.BlockSpec((tv, hd), lambda ti, vi: (vi, 0)),   # streamed W_emb vocab tile
                pl.BlockSpec((tm, 1), lambda ti, vi: (ti, 0)),    # shifted labels
                pl.BlockSpec((tm, 1), lambda ti, vi: (ti, 0)),    # shifted loss_reweight
            ],
            out_specs=pl.BlockSpec((tm, _NSTATS), lambda ti, vi: (ti, 0)),
            scratch_shapes=[
                pltpu.VMEM((tm, 1), jnp.float32),   # running max
                pltpu.VMEM((tm, 1), jnp.float32),   # running sum-exp
                pltpu.VMEM((tm, 1), jnp.float32),   # label logit
                pltpu.VMEM((tm, 1), jnp.int32),     # running argmax
            ],
        ),
        compiler_params=pltpu.CompilerParams(
            dimension_semantics=("parallel", "arbitrary")),
        cost_estimate=cost,
    )(h, w_emb, shift_labels, shift_w)


# ------------------------------------------------------------------ model
def init_params(key, *, vocab=2048, hidden=128, ffn=256):
    k1, k2, k3 = jax.random.split(key, 3)
    return {
        # bf16 weights: MXU bf16 peak, half the HBM/VMEM bytes on the vocab weight stream
        "W_emb": (0.02 * jax.random.normal(k1, (vocab, hidden), jnp.float32)).astype(jnp.bfloat16),
        "W1": (0.02 * jax.random.normal(k2, (hidden, ffn), jnp.float32)).astype(jnp.bfloat16),
        "W2": (0.02 * jax.random.normal(k3, (ffn, hidden), jnp.float32)).astype(jnp.bfloat16),
    }


@jax.jit
def multi_llama_forward(params, lang_x, vision_x, attention_mask, labels,
                        loss_reweight, key_words_query=None):
    """Reproduces MultiLLaMAForCausalLM.forward (labels.shape == lang_x.shape branch)."""
    del key_words_query
    B, S = lang_x.shape
    V, H = params["W_emb"].shape
    N = B * S

    # ---- embedding_layer (flag='Text'): tied-weight token embedding lookup (XLA gather)
    # TODO(synk): MyEmbedding's vision encoder / loss_match branch is not exercised in
    #             'Text' flag mode; vision_x is accepted but unused here.
    emb = jnp.take(params["W_emb"], lang_x.reshape(-1), axis=0)        # (N, H) bf16

    # ---- lang_model stand-in: one residual SiLU-MLP block (Pallas, token-tiled)
    # TODO(synk): the 40-layer LLaMA decoder (RoPE attention, RMSNorm) and attention_mask
    #             handling are not reproduced; attention_mask is unused.
    del attention_mask
    hid = mlp_block(emb, params["W1"], params["W2"])                   # (N, H) bf16

    # ---- causal shift folded into the token stream: token t is paired with label t+1;
    #      the last position of every sequence gets ignore_index / weight 0, which is
    #      equivalent to logits[:, :-1] vs labels[:, 1:] without touching the logits.
    ign = jnp.full((B, 1), -100, labels.dtype)
    shift_labels = jnp.concatenate([labels[:, 1:], ign], axis=1).reshape(N, 1).astype(jnp.int32)
    shift_w = jnp.concatenate(
        [loss_reweight[:, 1:].astype(jnp.float32), jnp.zeros((B, 1), jnp.float32)],
        axis=1).reshape(N, 1)

    # ---- fused tied lm_head + online-softmax CE + argmax (logits never hit HBM)
    stats = fused_head_ce(hid, params["W_emb"], shift_labels, shift_w)
    ce, valid, correct, wce, w = (stats[:, 0], stats[:, 1], stats[:, 2],
                                  stats[:, 3], stats[:, 4])

    # HF LlamaForCausalLM internal loss: mean CE over non-ignored shifted tokens
    # (guarded against the all-ignored case instead of producing NaN/Inf).
    valid_sum = jnp.sum(valid)
    hf_loss = jnp.where(valid_sum > 0, jnp.sum(ce) / jnp.maximum(valid_sum, 1.0), 0.0)

    # loss_reg per the reference (computed, then superseded by output['loss'] in the return)
    w_sum = jnp.sum(w)
    loss_reg = jnp.where(w_sum > 0, jnp.sum(wce) / jnp.maximum(w_sum, 1e-30), 0.0)
    loss_match = None
    loss = loss_reg if loss_match is None else 0.8 * loss_reg + 0.2 * loss_match
    del loss  # reference returns output['loss'], not this

    # Accuracy: per-sequence exact match of argmax predictions (ignoring -100 positions)
    seq_correct = jnp.all(correct.reshape(B, S) > 0.5, axis=-1)
    accuracy = jnp.sum(seq_correct).astype(jnp.float32) / B            # total = len(labels) = B

    # NOTE: the reference maps accuracy to the key 'logits' — kept for fidelity.
    return dict(logits=accuracy, loss=hf_loss)


# ------------------------------------------------------------------ demo
if __name__ == "__main__":
    key = jax.random.PRNGKey(0)
    kp, kx, kw, kv = jax.random.split(key, 4)

    B, S, H, V, F = 2, 16, 128, 2048, 256
    params = init_params(kp, vocab=V, hidden=H, ffn=F)

    lang_x = jax.random.randint(kx, (B, S), 0, V, dtype=jnp.int32)
    labels = lang_x.at[:, :2].set(-100)                       # prompt tokens ignored
    loss_reweight = 0.5 + jax.random.uniform(kw, (B, S), dtype=jnp.float32)
    attention_mask = jnp.ones((B, S), jnp.int32)
    vision_x = jax.random.normal(kv, (B, 1, 3, 16, 16, 4), jnp.float32)  # unused (Text flag)

    out = multi_llama_forward(params, lang_x, vision_x, attention_mask,
                              labels, loss_reweight, key_words_query=None)
    out = jax.tree_util.tree_map(jax.block_until_ready, out)

    assert jnp.isfinite(out["loss"]) and jnp.isfinite(out["logits"])
    print("KERNEL_OK")
</pallas_src>

<mosaic_0001>
module attributes {stable_mosaic.version = 11 : i64} {
  func.func @_mlp_block_kernel(%arg0: i32, %arg1: memref<32x128xbf16, #tpu.memory_space<vmem>>, %arg2: memref<128x256xbf16, #tpu.memory_space<vmem>>, %arg3: memref<256x128xbf16, #tpu.memory_space<vmem>>, %arg4: memref<32x128xbf16, #tpu.memory_space<vmem>>) attributes {dimension_semantics = [#tpu.dimension_semantics<parallel>], iteration_bounds = array<i64: 1>, scalar_prefetch = 0 : i64, scratch_operands = 0 : i64, tpu.core_type = #tpu.core_type<tc>, window_params = [{transform_indices = @transform_0, window_bounds = array<i64: 32, 128>}, {pipeline_mode = #tpu.pipeline_mode<synchronous>, transform_indices = @transform_1, window_bounds = array<i64: 128, 256>}, {pipeline_mode = #tpu.pipeline_mode<synchronous>, transform_indices = @transform_2, window_bounds = array<i64: 256, 128>}, {transform_indices = @transform_3, window_bounds = array<i64: 32, 128>}]} {
    %c0 = arith.constant 0 : index
    %c0_0 = arith.constant 0 : index
    %0 = vector.load %arg1[%c0, %c0_0] : memref<32x128xbf16, #tpu.memory_space<vmem>>, vector<32x128xbf16>
    %c0_1 = arith.constant 0 : index
    %c0_2 = arith.constant 0 : index
    %1 = vector.load %arg2[%c0_1, %c0_2] : memref<128x256xbf16, #tpu.memory_space<vmem>>, vector<128x256xbf16>
    %cst = arith.constant dense<0.000000e+00> : vector<32x256xf32>
    %2 = tpu.matmul %0, %1, %cst {dimension_numbers = #tpu.dot_dimension_numbers<[1], [0], [0], [1], [0, 0, 1, 1], [], []>} : vector<32x128xbf16>, vector<128x256xbf16>, vector<32x256xf32> -> vector<32x256xf32>
    %3 = arith.negf %2 : vector<32x256xf32>
    %4 = math.exp %3 : vector<32x256xf32>
    %cst_3 = arith.constant 1.000000e+00 : f32
    %5 = vector.broadcast %cst_3 : f32 to vector<32x256xf32>
    %6 = arith.addf %5, %4 : vector<32x256xf32>
    %7 = arith.divf %5, %6 : vector<32x256xf32>
    %8 = arith.mulf %2, %7 : vector<32x256xf32>
    %9 = arith.truncf %8 : vector<32x256xf32> to vector<32x256xbf16>
    %c0_4 = arith.constant 0 : index
    %c0_5 = arith.constant 0 : index
    %10 = vector.load %arg3[%c0_4, %c0_5] : memref<256x128xbf16, #tpu.memory_space<vmem>>, vector<256x128xbf16>
    %cst_6 = arith.constant dense<0.000000e+00> : vector<32x128xf32>
    %11 = tpu.matmul %9, %10, %cst_6 {dimension_numbers = #tpu.dot_dimension_numbers<[1], [0], [0], [1], [0, 0, 1, 1], [], []>} : vector<32x256xbf16>, vector<256x128xbf16>, vector<32x128xf32> -> vector<32x128xf32>
    %12 = arith.extf %0 : vector<32x128xbf16> to vector<32x128xf32>
    %13 = arith.addf %12, %11 : vector<32x128xf32>
    %14 = arith.truncf %13 : vector<32x128xf32> to vector<32x128xbf16>
    %c0_7 = arith.constant 0 : index
    %c0_8 = arith.constant 0 : index
    %15 = vector.load %arg4[%c0_7, %c0_8] : memref<32x128xbf16, #tpu.memory_space<vmem>>, vector<32x128xbf16>
    tpu.vector_store %arg4[%c0_7, %c0_8], %14 {strides = array<i32>} : memref<32x128xbf16, #tpu.memory_space<vmem>>, vector<32x128xbf16>,
    return
  }
  func.func @transform_0(%arg0: i32) -> (i32, i32) {
    %c0_i32 = arith.constant 0 : i32
    %c0_i32_0 = arith.constant 0 : i32
    return %arg0, %c0_i32 : i32, i32
  }
  func.func @transform_1(%arg0: i32) -> (i32, i32) {
    %c0_i32 = arith.constant 0 : i32
    %c0_i32_0 = arith.constant 0 : i32
    %c0_i32_1 = arith.constant 0 : i32
    return %c0_i32, %c0_i32_0 : i32, i32
  }
  func.func @transform_2(%arg0: i32) -> (i32, i32) {
    %c0_i32 = arith.constant 0 : i32
    %c0_i32_0 = arith.constant 0 : i32
    %c0_i32_1 = arith.constant 0 : i32
    return %c0_i32, %c0_i32_0 : i32, i32
  }
  func.func @transform_3(%arg0: i32) -> (i32, i32) {
    %c0_i32 = arith.constant 0 : i32
    %c0_i32_0 = arith.constant 0 : i32
    return %arg0, %c0_i32 : i32, i32
  }
}

module attributes {stable_mosaic.version = 11 : i64} {
  func.func @_head_ce_kernel(%arg0: i32, %arg1: i32, %arg2: memref<32x128xbf16, #tpu.memory_space<vmem>>, %arg3: memref<1024x128xbf16, #tpu.memory_space<vmem>>, %arg4: memref<32x1xi32, #tpu.memory_space<vmem>>, %arg5: memref<32x1xf32, #tpu.memory_space<vmem>>, %arg6: memref<32x8xf32, #tpu.memory_space<vmem>>, %arg7: memref<32x1xf32, #tpu.memory_space<vmem>>, %arg8: memref<32x1xf32, #tpu.memory_space<vmem>>, %arg9: memref<32x1xf32, #tpu.memory_space<vmem>>, %arg10: memref<32x1xi32, #tpu.memory_space<vmem>>) attributes {dimension_semantics = [#tpu.dimension_semantics<parallel>, #tpu.dimension_semantics<arbitrary>], iteration_bounds = array<i64: 1, 2>, scalar_prefetch = 0 : i64, scratch_operands = 4 : i64, tpu.core_type = #tpu.core_type<tc>, window_params = [{transform_indices = @transform_0, window_bounds = array<i64: 32, 128>}, {transform_indices = @transform_1, window_bounds = array<i64: 1024, 128>}, {transform_indices = @transform_2, window_bounds = array<i64: 32, 1>}, {transform_indices = @transform_3, window_bounds = array<i64: 32, 1>}, {transform_indices = @transform_4, window_bounds = array<i64: 32, 8>}]} {
    %c0_i32 = arith.constant 0 : i32
    %0 = arith.cmpi eq, %arg1, %c0_i32 : i32
    %1 = arith.extui %0 : i1 to i32
    %c0_i32_0 = arith.constant 0 : i32
    %2 = arith.cmpi ne, %1, %c0_i32_0 : i32
    scf.if %2 {
      %cst_28 = arith.constant 0xFF800000 : f32
      %49 = vector.broadcast %cst_28 : f32 to vector<32x1xf32>
      %c0_29 = arith.constant 0 : index
      %c0_30 = arith.constant 0 : index
      %50 = vector.load %arg7[%c0_29, %c0_30] : memref<32x1xf32, #tpu.memory_space<vmem>>, vector<32x1xf32>
      tpu.vector_store %arg7[%c0_29, %c0_30], %49 {strides = array<i32>} : memref<32x1xf32, #tpu.memory_space<vmem>>, vector<32x1xf32>,
      %cst_31 = arith.constant 0.000000e+00 : f32
      %51 = vector.broadcast %cst_31 : f32 to vector<32x1xf32>
      %c0_32 = arith.constant 0 : index
      %c0_33 = arith.constant 0 : index
      %52 = vector.load %arg8[%c0_32, %c0_33] : memref<32x1xf32, #tpu.memory_space<vmem>>, vector<32x1xf32>
      tpu.vector_store %arg8[%c0_32, %c0_33], %51 {strides = array<i32>} : memref<32x1xf32, #tpu.memory_space<vmem>>, vector<32x1xf32>,
      %cst_34 = arith.constant 0.000000e+00 : f32
      %53 = vector.broadcast %cst_34 : f32 to vector<32x1xf32>
      %c0_35 = arith.constant 0 : index
      %c0_36 = arith.constant 0 : index
      %54 = vector.load %arg9[%c0_35, %c0_36] : memref<32x1xf32, #tpu.memory_space<vmem>>, vector<32x1xf32>
      tpu.vector_store %arg9[%c0_35, %c0_36], %53 {strides = array<i32>} : memref<32x1xf32, #tpu.memory_space<vmem>>, vector<32x1xf32>,
      %c0_i32_37 = arith.constant 0 : i32
      %55 = vector.broadcast %c0_i32_37 : i32 to vector<32x1xi32>
      %c0_38 = arith.constant 0 : index
      %c0_39 = arith.constant 0 : index
      %56 = vector.load %arg10[%c0_38, %c0_39] : memref<32x1xi32, #tpu.memory_space<vmem>>, vector<32x1xi32>
      tpu.vector_store %arg10[%c0_38, %c0_39], %55 {strides = array<i32>} : memref<32x1xi32, #tpu.memory_space<vmem>>, vector<32x1xi32>,
    } else {
    }
    %c0 = arith.constant 0 : index
    %c0_1 = arith.constant 0 : index
    %3 = vector.load %arg4[%c0, %c0_1] : memref<32x1xi32, #tpu.memory_space<vmem>>, vector<32x1xi32>
    %c0_2 = arith.constant 0 : index
    %c0_3 = arith.constant 0 : index
    %4 = vector.load %arg2[%c0_2, %c0_3] : memref<32x128xbf16, #tpu.memory_space<vmem>>, vector<32x128xbf16>
    %c0_4 = arith.constant 0 : index
    %c0_5 = arith.constant 0 : index
    %5 = vector.load %arg3[%c0_4, %c0_5] : memref<1024x128xbf16, #tpu.memory_space<vmem>>, vector<1024x128xbf16>
    %cst = arith.constant dense<0.000000e+00> : vector<32x1024xf32>
    %6 = tpu.matmul %4, %5, %cst {dimension_numbers = #tpu.dot_dimension_numbers<[1], [1], [0], [0], [0, 0, 1, 0], [], []>} : vector<32x128xbf16>, vector<1024x128xbf16>, vector<32x1024xf32> -> vector<32x1024xf32>
    %c1024_i32 = arith.constant 1024 : i32
    %7 = arith.muli %arg1, %c1024_i32 : i32
    %8 = tpu.iota {dimensions = array<i32: 1>} : vector<32x1024xi32>
    %9 = vector.broadcast %7 : i32 to vector<32x1024xi32>
    %10 = arith.addi %9, %8 : vector<32x1024xi32>
    %11 = vector.broadcast %3 : vector<32x1xi32> to vector<32x1024xi32>
    %12 = arith.cmpi eq, %10, %11 : vector<32x1024xi32>
    %c0_6 = arith.constant 0 : index
    %c0_7 = arith.constant 0 : index
    %13 = vector.load %arg9[%c0_6, %c0_7] : memref<32x1xf32, #tpu.memory_space<vmem>>, vector<32x1xf32>
    %cst_8 = arith.constant 0.000000e+00 : f32
    %14 = vector.broadcast %cst_8 : f32 to vector<32x1024xf32>
    %15 = arith.select %12, %6, %14 : vector<32x1024xi1>, vector<32x1024xf32>
    %cst_9 = arith.constant dense<0.000000e+00> : vector<32xf32>
    %16 = vector.multi_reduction <add>, %15, %cst_9 [1] : vector<32x1024xf32> to vector<32xf32>
    %17 = vector.shape_cast %16 : vector<32xf32> to vector<32x1xf32>
    %18 = arith.addf %13, %17 : vector<32x1xf32>
    %c0_10 = arith.constant 0 : index
    %c0_11 = arith.constant 0 : index
    %19 = vector.load %arg9[%c0_10, %c0_11] : memref<32x1xf32, #tpu.memory_space<vmem>>, vector<32x1xf32>
    tpu.vector_store %arg9[%c0_10, %c0_11], %18 {strides = array<i32>} : memref<32x1xf32, #tpu.memory_space<vmem>>, vector<32x1xf32>,
    %cst_12 = arith.constant dense<0xFF800000> : vector<32xf32>
    %20 = vector.multi_reduction <maximumf>, %6, %cst_12 [1] : vector<32x1024xf32> to vector<32xf32>
    %21 = vector.shape_cast %20 : vector<32xf32> to vector<32x1xf32>
    %22 = vector.broadcast %21 : vector<32x1xf32> to vector<32x1024xf32>
    %23 = arith.cmpf oeq, %6, %22 : vector<32x1024xf32>
    %c1073741824_i32 = arith.constant 1073741824 : i32
    %24 = vector.broadcast %c1073741824_i32 : i32 to vector<32x1024xi32>
    %25 = arith.select %23, %10, %24 : vector<32x1024xi1>, vector<32x1024xi32>
    %cst_13 = arith.constant dense<2147483647> : vector<32xi32>
    %26 = vector.multi_reduction <minsi>, %25, %cst_13 [1] : vector<32x1024xi32> to vector<32xi32>
    %27 = vector.shape_cast %26 : vector<32xi32> to vector<32x1xi32>
    %c0_14 = arith.constant 0 : index
    %c0_15 = arith.constant 0 : index
    %28 = vector.load %arg7[%c0_14, %c0_15] : memref<32x1xf32, #tpu.memory_space<vmem>>, vector<32x1xf32>
    %29 = arith.cmpf ogt, %21, %28 : vector<32x1xf32>
    %c0_16 = arith.constant 0 : index
    %c0_17 = arith.constant 0 : index
    %30 = vector.load %arg10[%c0_16, %c0_17] : memref<32x1xi32, #tpu.memory_space<vmem>>, vector<32x1xi32>
    %31 = arith.select %29, %27, %30 : vector<32x1xi1>, vector<32x1xi32>
    %c0_18 = arith.constant 0 : index
    %c0_19 = arith.constant 0 : index
    %32 = vector.load %arg10[%c0_18, %c0_19] : memref<32x1xi32, #tpu.memory_space<vmem>>, vector<32x1xi32>
    tpu.vector_store %arg10[%c0_18, %c0_19], %31 {strides = array<i32>} : memref<32x1xi32, #tpu.memory_space<vmem>>, vector<32x1xi32>,
    %33 = arith.maximumf %28, %21 : vector<32x1xf32>
    %c0_20 = arith.constant 0 : index
    %c0_21 = arith.constant 0 : index
    %34 = vector.load %arg8[%c0_20, %c0_21] : memref<32x1xf32, #tpu.memory_space<vmem>>, vector<32x1xf32>
    %35 = arith.subf %28, %33 : vector<32x1xf32>
    %36 = math.exp %35 : vector<32x1xf32>
    %37 = arith.mulf %34, %36 : vector<32x1xf32>
    %38 = vector.broadcast %33 : vector<32x1xf32> to vector<32x1024xf32>
    %39 = arith.subf %6, %38 : vector<32x1024xf32>
    %40 = math.exp %39 : vector<32x1024xf32>
    %cst_22 = arith.constant dense<0.000000e+00> : vector<32xf32>
    %41 = vector.multi_reduction <add>, %40, %cst_22 [1] : vector<32x1024xf32> to vector<32xf32>
    %42 = vector.shape_cast %41 : vector<32xf32> to vector<32x1xf32>
    %43 = arith.addf %37, %42 : vector<32x1xf32>
    %c0_23 = arith.constant 0 : index
    %c0_24 = arith.constant 0 : index
    %44 = vector.load %arg8[%c0_23, %c0_24] : memref<32x1xf32, #tpu.memory_space<vmem>>, vector<32x1xf32>
    tpu.vector_store %arg8[%c0_23, %c0_24], %43 {strides = array<i32>} : memref<32x1xf32, #tpu.memory_space<vmem>>, vector<32x1xf32>,
    %c0_25 = arith.constant 0 : index
    %c0_26 = arith.constant 0 : index
    %45 = vector.load %arg7[%c0_25, %c0_26] : memref<32x1xf32, #tpu.memory_space<vmem>>, vector<32x1xf32>
    tpu.vector_store %arg7[%c0_25, %c0_26], %33 {strides = array<i32>} : memref<32x1xf32, #tpu.memory_space<vmem>>, vector<32x1xf32>,
    %c1_i32 = arith.constant 1 : i32
    %46 = arith.cmpi eq, %arg1, %c1_i32 : i32
    %47 = arith.extui %46 : i1 to i32
    %c0_i32_27 = arith.constant 0 : i32
    %48 = arith.cmpi ne, %47, %c0_i32_27 : i32
    scf.if %48 {
      %c0_28 = arith.constant 0 : index
      %c0_29 = arith.constant 0 : index
      %49 = vector.load %arg7[%c0_28, %c0_29] : memref<32x1xf32, #tpu.memory_space<vmem>>, vector<32x1xf32>
      %c0_30 = arith.constant 0 : index
      %c0_31 = arith.constant 0 : index
      %50 = vector.load %arg8[%c0_30, %c0_31] : memref<32x1xf32, #tpu.memory_space<vmem>>, vector<32x1xf32>
      %51 = math.log %50 : vector<32x1xf32>
      %52 = arith.addf %49, %51 : vector<32x1xf32>
      %c-100_i32 = arith.constant -100 : i32
      %53 = vector.broadcast %c-100_i32 : i32 to vector<32x1xi32>
      %54 = arith.cmpi ne, %3, %53 : vector<32x1xi32>
      %c0_32 = arith.constant 0 : index
      %c0_33 = arith.constant 0 : index
      %55 = vector.load %arg9[%c0_32, %c0_33] : memref<32x1xf32, #tpu.memory_space<vmem>>, vector<32x1xf32>
      %56 = arith.subf %52, %55 : vector<32x1xf32>
      %cst_34 = arith.constant 0.000000e+00 : f32
      %57 = vector.broadcast %cst_34 : f32 to vector<32x1xf32>
      %58 = arith.select %54, %56, %57 : vector<32x1xi1>, vector<32x1xf32>
      %c0_35 = arith.constant 0 : index
      %c0_36 = arith.constant 0 : index
      %59 = vector.load %arg5[%c0_35, %c0_36] : memref<32x1xf32, #tpu.memory_space<vmem>>, vector<32x1xf32>
      %c0_37 = arith.constant 0 : index
      %c0_38 = arith.constant 0 : index
      %60 = vector.load %arg10[%c0_37, %c0_38] : memref<32x1xi32, #tpu.memory_space<vmem>>, vector<32x1xi32>
      %61 = arith.cmpi eq, %60, %3 : vector<32x1xi32>
      %cst_39 = arith.constant dense<true> : vector<32x1xi1>
      %62 = arith.xori %54, %cst_39 : vector<32x1xi1>
      %63 = arith.ori %61, %62 : vector<32x1xi1>
      %64 = tpu.iota {dimensions = array<i32: 1>} : vector<32x8xi32>
      %c0_i32_40 = arith.constant 0 : i32
      %65 = vector.broadcast %c0_i32_40 : i32 to vector<32x8xi32>
      %66 = arith.cmpi eq, %64, %65 : vector<32x8xi32>
      %cst_41 = arith.constant 0.000000e+00 : f32
      %67 = vector.shape_cast %58 : vector<32x1xf32> to vector<32x1xf32>
      %68 = vector.broadcast %67 : vector<32x1xf32> to vector<32x8xf32>
      %69 = vector.broadcast %cst_41 : f32 to vector<32x8xf32>
      %70 = arith.select %66, %68, %69 : vector<32x8xi1>, vector<32x8xf32>
      %c1_i32_42 = arith.constant 1 : i32
      %71 = vector.broadcast %c1_i32_42 : i32 to vector<32x8xi32>
      %72 = arith.cmpi eq, %64, %71 : vector<32x8xi32>
      %73 = arith.extui %54 : vector<32x1xi1> to vector<32x1xi32>
      %74 = arith.sitofp %73 : vector<32x1xi32> to vector<32x1xf32>
      %75 = vector.shape_cast %74 : vector<32x1xf32> to vector<32x1xf32>
      %76 = vector.broadcast %75 : vector<32x1xf32> to vector<32x8xf32>
      %77 = arith.select %72, %76, %70 : vector<32x8xi1>, vector<32x8xf32>
      %c2_i32 = arith.constant 2 : i32
      %78 = vector.broadcast %c2_i32 : i32 to vector<32x8xi32>
      %79 = arith.cmpi eq, %64, %78 : vector<32x8xi32>
      %80 = arith.extui %63 : vector<32x1xi1> to vector<32x1xi32>
      %81 = arith.sitofp %80 : vector<32x1xi32> to vector<32x1xf32>
      %82 = vector.shape_cast %81 : vector<32x1xf32> to vector<32x1xf32>
      %83 = vector.broadcast %82 : vector<32x1xf32> to vector<32x8xf32>
      %84 = arith.select %79, %83, %77 : vector<32x8xi1>, vector<32x8xf32>
      %c3_i32 = arith.constant 3 : i32
      %85 = vector.broadcast %c3_i32 : i32 to vector<32x8xi32>
      %86 = arith.cmpi eq, %64, %85 : vector<32x8xi32>
      %87 = arith.mulf %59, %58 : vector<32x1xf32>
      %88 = vector.shape_cast %87 : vector<32x1xf32> to vector<32x1xf32>
      %89 = vector.broadcast %88 : vector<32x1xf32> to vector<32x8xf32>
      %90 = arith.select %86, %89, %84 : vector<32x8xi1>, vector<32x8xf32>
      %c4_i32 = arith.constant 4 : i32
      %91 = vector.broadcast %c4_i32 : i32 to vector<32x8xi32>
      %92 = arith.cmpi eq, %64, %91 : vector<32x8xi32>
      %93 = vector.shape_cast %59 : vector<32x1xf32> to vector<32x1xf32>
      %94 = vector.broadcast %93 : vector<32x1xf32> to vector<32x8xf32>
      %95 = arith.select %92, %94, %90 : vector<32x8xi1>, vector<32x8xf32>
      %c0_43 = arith.constant 0 : index
      %c0_44 = arith.constant 0 : index
      %96 = vector.load %arg6[%c0_43, %c0_44] : memref<32x8xf32, #tpu.memory_space<vmem>>, vector<32x8xf32>
      tpu.vector_store %arg6[%c0_43, %c0_44], %95 {strides = array<i32>} : memref<32x8xf32, #tpu.memory_space<vmem>>, vector<32x8xf32>,
    } else {
    }
    return
  }
  func.func @transform_0(%arg0: i32, %arg1: i32) -> (i32, i32) {
    %c0_i32 = arith.constant 0 : i32
    %c0_i32_0 = arith.constant 0 : i32
    return %arg0, %c0_i32 : i32, i32
  }
  func.func @transform_1(%arg0: i32, %arg1: i32) -> (i32, i32) {
    %c0_i32 = arith.constant 0 : i32
    %c0_i32_0 = arith.constant 0 : i32
    return %arg1, %c0_i32 : i32, i32
  }
  func.func @transform_2(%arg0: i32, %arg1: i32) -> (i32, i32) {
    %c0_i32 = arith.constant 0 : i32
    %c0_i32_0 = arith.constant 0 : i32
    return %arg0, %c0_i32 : i32, i32
  }
  func.func @transform_3(%arg0: i32, %arg1: i32) -> (i32, i32) {
    %c0_i32 = arith.constant 0 : i32
    %c0_i32_0 = arith.constant 0 : i32
    return %arg0, %c0_i32 : i32, i32
  }
  func.func @transform_4(%arg0: i32, %arg1: i32) -> (i32, i32) {
    %c0_i32 = arith.constant 0 : i32
    %c0_i32_0 = arith.constant 0 : i32
    return %arg0, %c0_i32 : i32, i32
  }
}

</mosaic_0001>

<llo_original>
// kernel: multi_llama_forward.2
$region0: #{multi_llama_forward.2}
  #allocation0 [shape = 'u32[]', space=smem, size = 0x4, offset = 0x4, fixed_abs, tag = 'smem constant byte address 0x4 - core index']
  #allocation1 [shape = 'u32[144,128]{1,0:T(1,128)}', space=vmem, size = 0x12000, scoped, tag = 'internal scratch']
  %s0 = inlined_call_operand.vmem [shape: bf16[32,128], index: 0, kind: input, shape index: {}]
  %s1 = inlined_call_operand.vmem [shape: bf16[128,256], index: 1, kind: input, shape index: {}]
  %s2 = inlined_call_operand.hbm [shape: bf16[256,128], index: 2, kind: input, shape index: {}]
  %s3 = inlined_call_operand.vmem [shape: bf16[32,128], index: 3, kind: output, shape index: {}]
  %s4 = sld [smem:[#allocation0]]
  $region26: #{multi_llama_forward.2} parent=0
    _
  %s6 = ssub.s32 1, %s4
  %s7 = scalar_select 0, %s6, %s4
  $region1: #{multi_llama_forward.2} parent=0
    #allocation2 [shape = 'u8[65536]{0}', space=vmem, size = 0x10000, scoped, tag = 'input window, operand 2, single buffered']
    #allocation3 [shape = 's32[1]{0}', space=sflag, size = 0x4, scoped, tag = 'scoped memory for multi_llama_forward.2']
    %8 = vsyncpa [#allocation3], 0
    // Predicated region
    $region2: #{multi_llama_forward.2} parent=1 // pred_check
      _
    $region3: #{multi_llama_forward.2} parent=1 // pred_check_branch
      %10 = sbr.rel (0) target = $region5
    $region4: #{multi_llama_forward.2} parent=1 // pred_region
      _
    $region5: #{multi_llama_forward.2} parent=1 // pred_fallthru
      _
    // Predicated region
    $region6: #{multi_llama_forward.2} parent=1 // pred_check
      _
    $region7: #{multi_llama_forward.2} parent=1 // pred_check_branch
      %12 = sbr.rel (0) target = $region9
    $region8: #{multi_llama_forward.2} parent=1 // pred_region
      _
    $region9: #{multi_llama_forward.2} parent=1 // pred_fallthru
      _
    // Predicated region
    $region10: #{multi_llama_forward.2} parent=1 // pred_check
      _
    $region11: #{multi_llama_forward.2} parent=1 // pred_check_branch
      %14 = sbr.rel (0) target = $region13
    $region12: #{multi_llama_forward.2} parent=1 // pred_region
      %s16 = ssub.s32 2048, 2048
      %17 = vsyncadd [#allocation3], %s16
      %s18 = sshll.u32 [#allocation2], 4
      %s19 = int_to_ptr.vmem [resolvable:$true] %s18
      %24 = dma.hbm_to_vmem [thread:$0]  %s2, 2048, %s19, [#allocation3], 64, 64, 4
    $region13: #{multi_llama_forward.2} parent=1 // pred_fallthru
      _
    // Predicated region
    $region14: #{multi_llama_forward.2} parent=1 // pred_check
      _
    $region15: #{multi_llama_forward.2} parent=1 // pred_check_branch
      %26 = sbr.rel (0) target = $region17
    $region16: #{multi_llama_forward.2} parent=1 // pred_region
      %27 = dma.done [#allocation3], 2048
    $region17: #{multi_llama_forward.2} parent=1 // pred_fallthru
      _
    %v29 = vld [vmem:[%s0] sm:$0xf]
    %v30 = vld [vmem:[%s0 + $0x4] sm:$0xf]
    %v31 = vld [vmem:[%s0 + $0x8] sm:$0xf]
    %v32 = vld [vmem:[%s0 + $0xc] sm:$0xf]
    %v33 = vld [vmem:[%s1] sm:$0xff]
    %v34 = vld [vmem:[%s1 + $0x8] sm:$0xff]
    %v35 = vld [vmem:[%s1 + $0x10] sm:$0xff]
    %v36 = vld [vmem:[%s1 + $0x18] sm:$0xff]
    %v37 = vld [vmem:[%s1 + $0x20] sm:$0xff]
    %v38 = vld [vmem:[%s1 + $0x28] sm:$0xff]
    %v39 = vld [vmem:[%s1 + $0x30] sm:$0xff]
    %v40 = vld [vmem:[%s1 + $0x38] sm:$0xff]
    %v41 = vld [vmem:[%s1 + $0x40] sm:$0xff]
    %v42 = vld [vmem:[%s1 + $0x48] sm:$0xff]
    %v43 = vld [vmem:[%s1 + $0x50] sm:$0xff]
    %v44 = vld [vmem:[%s1 + $0x58] sm:$0xff]
    %v45 = vld [vmem:[%s1 + $0x60] sm:$0xff]
    %v46 = vld [vmem:[%s1 + $0x68] sm:$0xff]
    %v47 = vld [vmem:[%s1 + $0x70] sm:$0xff]
    %v48 = vld [vmem:[%s1 + $0x78] sm:$0xff]
    %v53 = vunpack.c.l.b16 %v29
    %v54 = vunpack.c.l.b16 %v30
    %v55 = vunpack.c.l.b16 %v31
    %v56 = vunpack.c.l.b16 %v32
    %v57 = vpack.c.b16 %v54, %v53
    %v58 = vpack.c.b16 %v56, %v55
    %v77 = vunpack.c.l.b16 %v33
    %v78 = vunpack.c.h.b16 %v33
    %v79 = vunpack.c.l.b16 %v34
    %v80 = vunpack.c.h.b16 %v34
    %v81 = vunpack.c.l.b16 %v35
    %v82 = vunpack.c.h.b16 %v35
    %v83 = vunpack.c.l.b16 %v36
    %v84 = vunpack.c.h.b16 %v36
    %v85 = vunpack.c.l.b16 %v37
    %v86 = vunpack.c.h.b16 %v37
    %v87 = vunpack.c.l.b16 %v38
    %v88 = vunpack.c.h.b16 %v38
    %v89 = vunpack.c.l.b16 %v39
    %v90 = vunpack.c.h.b16 %v39
    %v91 = vunpack.c.l.b16 %v40
    %v92 = vunpack.c.h.b16 %v40
    %v93 = vunpack.c.l.b16 %v41
    %v94 = vunpack.c.h.b16 %v41
    %v95 = vunpack.c.l.b16 %v42
    %v96 = vunpack.c.h.b16 %v42
    %v97 = vunpack.c.l.b16 %v43
    %v98 = vunpack.c.h.b16 %v43
    %v99 = vunpack.c.l.b16 %v44
    %v100 = vunpack.c.h.b16 %v44
    %v101 = vunpack.c.l.b16 %v45
    %v102 = vunpack.c.h.b16 %v45
    %v103 = vunpack.c.l.b16 %v46
    %v104 = vunpack.c.h.b16 %v46
    %v105 = vunpack.c.l.b16 %v47
    %v106 = vunpack.c.h.b16 %v47
    %v107 = vunpack.c.l.b16 %v48
    %v108 = vunpack.c.h.b16 %v48
    %v109 = vpack.c.b16 %v79, %v77
    %v110 = vpack.c.b16 %v80, %v78
    %v111 = vpack.c.b16 %v83, %v81
    %v112 = vpack.c.b16 %v84, %v82
    %v113 = vpack.c.b16 %v87, %v85
    %v114 = vpack.c.b16 %v88, %v86
    %v115 = vpack.c.b16 %v91, %v89
    %v116 = vpack.c.b16 %v92, %v90
    %v117 = vpack.c.b16 %v95, %v93
    %v118 = vpack.c.b16 %v96, %v94
    %v119 = vpack.c.b16 %v99, %v97
    %v120 = vpack.c.b16 %v100, %v98
    %v121 = vpack.c.b16 %v103, %v101
    %v122 = vpack.c.b16 %v104, %v102
    %v123 = vpack.c.b16 %v107, %v105
    %v124 = vpack.c.b16 %v108, %v106
    %141 = vmatprep.subr.bf16.mxu0 %v110
    %142 = vmatpush1.bf16.msra.mxu0 %v109
    %143 = vmatprep.subr.bf16.mxu0 %v112
    %144 = vmatpush1.bf16.msra.mxu0 %v111
    %145 = vmatprep.subr.bf16.mxu0 %v114
    %146 = vmatpush1.bf16.msra.mxu0 %v113
    %147 = vmatprep.subr.bf16.mxu0 %v116
    %148 = vmatpush1.bf16.msra.mxu0 %v115
    %149 = vmatprep.subr.bf16.mxu0 %v118
    %150 = vmatpush1.bf16.msra.mxu0 %v117
    %151 = vmatprep.subr.bf16.mxu0 %v120
    %152 = vmatpush1.bf16.msra.mxu0 %v119
    %153 = vmatprep.subr.bf16.mxu0 %v122
    %154 = vmatpush1.bf16.msra.mxu0 %v121
    %155 = vmatprep.subr.bf16.mxu0 %v124
    %156 = vmatpush1.bf16.msra.mxu0 %v123
    %157 = vmatprep.subr.bf16.mxu0 0
    %158 = vmatpush1.bf16.msra.mxu0 0
    %159 = vmatprep.subr.bf16.mxu0 0
    %160 = vmatpush1.bf16.msra.mxu0 0
    %161 = vmatprep.subr.bf16.mxu0 0
    %162 = vmatpush1.bf16.msra.mxu0 0
    %163 = vmatprep.subr.bf16.mxu0 0
    %164 = vmatpush1.bf16.msra.mxu0 0
    %165 = vmatprep.subr.bf16.mxu0 0
    %166 = vmatpush1.bf16.msra.mxu0 0
    %167 = vmatprep.subr.bf16.mxu0 0
    %168 = vmatpush1.bf16.msra.mxu0 0
    %169 = vmatprep.subr.bf16.mxu0 0
    %170 = vmatpush1.bf16.msra.mxu0 0
    %171 = vmatprep.subr.bf16.mxu0 0
    %172 = vmatpush1.bf16.msra.mxu0 0
    %173 = vmatprep.mubr.bf16.mxu0 0
    %174 = vmatmul.mubr.bf16.gmra.mrb[0].mxu0 %v57
    %v175 = vpop.f32.mrb[0].mxu0
    %v176 = vadd.f32 0.0, %v175
    %v177 = vpop.f32.mrb[0].mxu0
    %v178 = vadd.f32 0.0, %v177
    %v179 = vpop.f32.mrb[0].mxu0
    %v180 = vadd.f32 0.0, %v179
    %v181 = vpop.f32.mrb[0].mxu0
    %v182 = vadd.f32 0.0, %v181
    %183 = vmatprep.mubr.bf16.mxu0 0
    %184 = vmatmul.mubr.bf16.gmra.mrb[0].mxu0 %v58
    %v185 = vpop.f32.mrb[0].mxu0
    %v186 = vadd.f32 0.0, %v185
    %v187 = vpop.f32.mrb[0].mxu0
    %v188 = vadd.f32 0.0, %v187
    %v189 = vpop.f32.mrb[0].mxu0
    %v190 = vadd.f32 0.0, %v189
    %v191 = vpop.f32.mrb[0].mxu0
    %v192 = vadd.f32 0.0, %v191
    %193 = vdwg.mxu0
    %v194 = vxor.u32 %v176, 2147483648
    %v195 = vxor.u32 %v178, 2147483648
    %v196 = vxor.u32 %v180, 2147483648
    %v197 = vxor.u32 %v182, 2147483648
    %v198 = vxor.u32 %v186, 2147483648
    %v199 = vxor.u32 %v188, 2147483648
    %v200 = vxor.u32 %v190, 2147483648
    %v201 = vxor.u32 %v192, 2147483648
    %v202 = vmul.f32 %v194, 1.442695
    %v203 = vpow.pop %v202
    %v204 = vmul.f32 %v195, 1.442695
    %v205 = vpow.pop %v204
    %v206 = vmul.f32 %v196, 1.442695
    %v207 = vpow.pop %v206
    %v208 = vmul.f32 %v197, 1.442695
    %v209 = vpow.pop %v208
    %v210 = vmul.f32 %v198, 1.442695
    %v211 = vpow.pop %v210
    %v212 = vmul.f32 %v199, 1.442695
    %v213 = vpow.pop %v212
    %v214 = vmul.f32 %v200, 1.442695
    %v215 = vpow.pop %v214
    %v216 = vmul.f32 %v201, 1.442695
    %v217 = vpow.pop %v216
    %v218 = vadd.f32 %v203, 1.0
    %v219 = vadd.f32 %v205, 1.0
    %v220 = vadd.f32 %v207, 1.0
    %v221 = vadd.f32 %v209, 1.0
    %v222 = vadd.f32 %v211, 1.0
    %v223 = vadd.f32 %v213, 1.0
    %v224 = vadd.f32 %v215, 1.0
    %v225 = vadd.f32 %v217, 1.0
    %v226 = vrcp.pop %v218
    %v227 = vmul.f32 1.0, %v226
    %v228 = vrcp.pop %v219
    %v229 = vmul.f32 1.0, %v228
    %v230 = vrcp.pop %v220
    %v231 = vmul.f32 1.0, %v230
    %v232 = vrcp.pop %v221
    %v233 = vmul.f32 1.0, %v232
    %v234 = vrcp.pop %v222
    %v235 = vmul.f32 1.0, %v234
    %v236 = vrcp.pop %v223
    %v237 = vmul.f32 1.0, %v236
    %v238 = vrcp.pop %v224
    %v239 = vmul.f32 1.0, %v238
    %v240 = vrcp.pop %v225
    %v241 = vmul.f32 1.0, %v240
    %v242 = vmul.f32 %v176, %v227
    %v243 = vmul.f32 %v178, %v229
    %v244 = vmul.f32 %v180, %v231
    %v245 = vmul.f32 %v182, %v233
    %v246 = vmul.f32 %v186, %v235
    %v247 = vmul.f32 %v188, %v237
    %v248 = vmul.f32 %v190, %v239
    %v249 = vmul.f32 %v192, %v241
    %v250 = vpack.c.bf16 %v244, %v242
    %v251 = vpack.c.bf16 %v245, %v243
    %v252 = vpack.c.bf16 %v248, %v246
    %v253 = vpack.c.bf16 %v249, %v247
    %v254 = vld [vmem:[#allocation2] sm:$0xf]
    %v255 = vld [vmem:[#allocation2 + $0x4] sm:$0xf]
    %v256 = vld [vmem:[#allocation2 + $0x8] sm:$0xf]
    %v257 = vld [vmem:[#allocation2 + $0xc] sm:$0xf]
    %v258 = vld [vmem:[#allocation2 + $0x10] sm:$0xf]
    %v259 = vld [vmem:[#allocation2 + $0x14] sm:$0xf]
    %v260 = vld [vmem:[#allocation2 + $0x18] sm:$0xf]
    %v261 = vld [vmem:[#allocation2 + $0x1c] sm:$0xf]
    %v262 = vld [vmem:[#allocation2 + $0x20] sm:$0xf]
    %v263 = vld [vmem:[#allocation2 + $0x24] sm:$0xf]
    %v264 = vld [vmem:[#allocation2 + $0x28] sm:$0xf]
    %v265 = vld [vmem:[#allocation2 + $0x2c] sm:$0xf]
    %v266 = vld [vmem:[#allocation2 + $0x30] sm:$0xf]
    %v267 = vld [vmem:[#allocation2 + $0x34] sm:$0xf]
    %v268 = vld [vmem:[#allocation2 + $0x38] sm:$0xf]
    %v269 = vld [vmem:[#allocation2 + $0x3c] sm:$0xf]
    %v270 = vld [vmem:[#allocation2 + $0x40] sm:$0xf]
    %v271 = vld [vmem:[#allocation2 + $0x44] sm:$0xf]
    %v272 = vld [vmem:[#allocation2 + $0x48] sm:$0xf]
    %v273 = vld [vmem:[#allocation2 + $0x4c] sm:$0xf]
    %v274 = vld [vmem:[#allocation2 + $0x50] sm:$0xf]
    %v275 = vld [vmem:[#allocation2 + $0x54] sm:$0xf]
    %v276 = vld [vmem:[#allocation2 + $0x58] sm:$0xf]
    %v277 = vld [vmem:[#allocation2 + $0x5c] sm:$0xf]
    %v278 = vld [vmem:[#allocation2 + $0x60] sm:$0xf]
    %v279 = vld [vmem:[#allocation2 + $0x64] sm:$0xf]
    %v280 = vld [vmem:[#allocation2 + $0x68] sm:$0xf]
    %v281 = vld [vmem:[#allocation2 + $0x6c] sm:$0xf]
    %v282 = vld [vmem:[#allocation2 + $0x70] sm:$0xf]
    %v283 = vld [vmem:[#allocation2 + $0x74] sm:$0xf]
    %v284 = vld [vmem:[#allocation2 + $0x78] sm:$0xf]
    %v285 = vld [vmem:[#allocation2 + $0x7c] sm:$0xf]
    %v318 = vunpack.c.l.b16 %v254
    %v319 = vunpack.c.l.b16 %v255
    %v320 = vunpack.c.l.b16 %v256
    %v321 = vunpack.c.l.b16 %v257
    %v322 = vunpack.c.l.b16 %v258
    %v323 = vunpack.c.l.b16 %v259
    %v324 = vunpack.c.l.b16 %v260
    %v325 = vunpack.c.l.b16 %v261
    %v326 = vunpack.c.l.b16 %v262
    %v327 = vunpack.c.l.b16 %v263
    %v328 = vunpack.c.l.b16 %v264
    %v329 = vunpack.c.l.b16 %v265
    %v330 = vunpack.c.l.b16 %v266
    %v331 = vunpack.c.l.b16 %v267
    %v332 = vunpack.c.l.b16 %v268
    %v333 = vunpack.c.l.b16 %v269
    %v334 = vunpack.c.l.b16 %v270
    %v335 = vunpack.c.l.b16 %v271
    %v336 = vunpack.c.l.b16 %v272
    %v337 = vunpack.c.l.b16 %v273
    %v338 = vunpack.c.l.b16 %v274
    %v339 = vunpack.c.l.b16 %v275
    %v340 = vunpack.c.l.b16 %v276
    %v341 = vunpack.c.l.b16 %v277
    %v342 = vunpack.c.l.b16 %v278
    %v343 = vunpack.c.l.b16 %v279
    %v344 = vunpack.c.l.b16 %v280
    %v345 = vunpack.c.l.b16 %v281
    %v346 = vunpack.c.l.b16 %v282
    %v347 = vunpack.c.l.b16 %v283
    %v348 = vunpack.c.l.b16 %v284
    %v349 = vunpack.c.l.b16 %v285
    %v350 = vpack.c.b16 %v319, %v318
    %v351 = vpack.c.b16 %v321, %v320
    %v352 = vpack.c.b16 %v323, %v322
    %v353 = vpack.c.b16 %v325, %v324
    %v354 = vpack.c.b16 %v327, %v326
    %v355 = vpack.c.b16 %v329, %v328
    %v356 = vpack.c.b16 %v331, %v330
    %v357 = vpack.c.b16 %v333, %v332
    %v358 = vpack.c.b16 %v335, %v334
    %v359 = vpack.c.b16 %v337, %v336
    %v360 = vpack.c.b16 %v339, %v338
    %v361 = vpack.c.b16 %v341, %v340
    %v362 = vpack.c.b16 %v343, %v342
    %v363 = vpack.c.b16 %v345, %v344
    %v364 = vpack.c.b16 %v347, %v346
    %v365 = vpack.c.b16 %v349, %v348
    %382 = vmatprep.subr.bf16.mxu0 0
    %383 = vmatpush1.bf16.msra.mxu0 %v350
    %384 = vmatprep.subr.bf16.mxu0 0
    %385 = vmatpush1.bf16.msra.mxu0 %v351
    %386 = vmatprep.subr.bf16.mxu0 0
    %387 = vmatpush1.bf16.msra.mxu0 %v352
    %388 = vmatprep.subr.bf16.mxu0 0
    %389 = vmatpush1.bf16.msra.mxu0 %v353
    %390 = vmatprep.subr.bf16.mxu0 0
    %391 = vmatpush1.bf16.msra.mxu0 %v354
    %392 = vmatprep.subr.bf16.mxu0 0
    %393 = vmatpush1.bf16.msra.mxu0 %v355
    %394 = vmatprep.subr.bf16.mxu0 0
    %395 = vmatpush1.bf16.msra.mxu0 %v356
    %396 = vmatprep.subr.bf16.mxu0 0
    %397 = vmatpush1.bf16.msra.mxu0 %v357
    %398 = vmatprep.subr.bf16.mxu0 0
    %399 = vmatpush1.bf16.msra.mxu0 %v358
    %400 = vmatprep.subr.bf16.mxu0 0
    %401 = vmatpush1.bf16.msra.mxu0 %v359
    %402 = vmatprep.subr.bf16.mxu0 0
    %403 = vmatpush1.bf16.msra.mxu0 %v360
    %404 = vmatprep.subr.bf16.mxu0 0
    %405 = vmatpush1.bf16.msra.mxu0 %v361
    %406 = vmatprep.subr.bf16.mxu0 0
    %407 = vmatpush1.bf16.msra.mxu0 %v362
    %408 = vmatprep.subr.bf16.mxu0 0
    %409 = vmatpush1.bf16.msra.mxu0 %v363
    %410 = vmatprep.subr.bf16.mxu0 0
    %411 = vmatpush1.bf16.msra.mxu0 %v364
    %412 = vmatprep.subr.bf16.mxu0 0
    %413 = vmatpush1.bf16.msra.mxu0 %v365
    %414 = vmatprep.mubr.bf16.mxu0 %v251
    %415 = vmatmul.mubr.bf16.gmra.mrb[0].mxu0 %v250
    %v416 = vpop.f32.mrb[0].mxu0
    %v417 = vadd.f32 0.0, %v416
    %v418 = vpop.f32.mrb[0].mxu0
    %v419 = vpop.f32.mrb[0].mxu0
    %v420 = vadd.f32 0.0, %v419
    %v421 = vpop.f32.mrb[0].mxu0
    %422 = vmatprep.mubr.bf16.mxu0 %v253
    %423 = vmatmul.mubr.bf16.gmra.mrb[0].mxu0 %v252
    %v424 = vpop.f32.mrb[0].mxu0
    %v425 = vadd.f32 0.0, %v424
    %v426 = vpop.f32.mrb[0].mxu0
    %v427 = vpop.f32.mrb[0].mxu0
    %v428 = vadd.f32 0.0, %v427
    %v429 = vpop.f32.mrb[0].mxu0
    %430 = vdwg.mxu0
    %v431 = vunpack.c.l.bf16 %v29
    %v432 = vunpack.c.l.bf16 %v30
    %v433 = vunpack.c.l.bf16 %v31
    %v434 = vunpack.c.l.bf16 %v32
    %v435 = vadd.f32 %v431, %v417
    %v436 = vadd.f32 %v432, %v420
    %v437 = vadd.f32 %v433, %v425
    %v438 = vadd.f32 %v434, %v428
    %v439 = vpack.c.bf16 %v436, %v435
    %v440 = vpack.c.bf16 %v438, %v437
    %v443 = vunpack.c.l.b16 %v439
    %v444 = vunpack.c.h.b16 %v439
    %v445 = vunpack.c.l.b16 %v440
    %v446 = vunpack.c.h.b16 %v440
    %v447 = vpack.c.b16 %v443, %v443
    %v448 = vpack.c.b16 %v444, %v444
    %v449 = vpack.c.b16 %v445, %v445
    %v450 = vpack.c.b16 %v446, %v446
    %455 = vst [vmem:[%s3] sm:$0xf] %v447
    %456 = vst [vmem:[%s3 + $0x4] sm:$0xf] %v448
    %457 = vst [vmem:[%s3 + $0x8] sm:$0xf] %v449
    %458 = vst [vmem:[%s3 + $0xc] sm:$0xf] %v450
    // Predicated region
    $region18: #{multi_llama_forward.2} parent=1 // pred_check
      _
    $region19: #{multi_llama_forward.2} parent=1 // pred_check_branch
      %460 = sbr.rel (0) target = $region21
    $region20: #{multi_llama_forward.2} parent=1 // pred_region
      _
    $region21: #{multi_llama_forward.2} parent=1 // pred_fallthru
      _
    // Predicated region
    $region22: #{multi_llama_forward.2} parent=1 // pred_check
      _
    $region23: #{multi_llama_forward.2} parent=1 // pred_check_branch
      %462 = sbr.rel (0) target = $region25
    $region24: #{multi_llama_forward.2} parent=1 // pred_region
      _
    $region25: #{multi_llama_forward.2} parent=1 // pred_fallthru
      _
    %463 = vsyncpa [#allocation3], 1

// kernel: multi_llama_forward.3
$region0: #{multi_llama_forward.3}
  #allocation0 [shape = 'u32[]', space=smem, size = 0x4, offset = 0x4, fixed_abs, tag = 'smem constant byte address 0x4 - core index']
  #allocation1 [shape = 'u32[144,128]{1,0:T(1,128)}', space=vmem, size = 0x12000, scoped, tag = 'internal scratch']
  #allocation2 [shape = 'f32[32,1]{1,0:T(8,128)}', space=vmem, size = 0x4000, scoped, tag = 'scratch operand']
  #allocation3 [shape = 'f32[32,1]{1,0:T(8,128)}', space=vmem, size = 0x4000, scoped, tag = 'scratch operand']
  #allocation4 [shape = 'f32[32,1]{1,0:T(8,128)}', space=vmem, size = 0x4000, scoped, tag = 'scratch operand']
  #allocation5 [shape = 's32[32,1]{1,0:T(8,128)}', space=vmem, size = 0x4000, scoped, tag = 'scratch operand']
  %s0 = inlined_call_operand.vmem [shape: bf16[32,128], index: 0, kind: input, shape index: {}]
  %s1 = inlined_call_operand.hbm [shape: bf16[2048,128], index: 1, kind: input, shape index: {}]
  %s2 = inlined_call_operand.vmem [shape: s32[32,1], index: 2, kind: input, shape index: {}]
  %s3 = inlined_call_operand.vmem [shape: f32[32,1], index: 3, kind: input, shape index: {}]
  %s4 = inlined_call_operand.vmem [shape: f32[32,8], index: 4, kind: output, shape index: {}]
  %s5 = sld [smem:[#allocation0]]
  $region61: #{multi_llama_forward.3} parent=0
    _
  %s7 = ssub.s32 1, %s5
  %s8 = scalar_select 0, %s7, %s5
  $region1: #{multi_llama_forward.3} parent=0
    #allocation6 [shape = 'u8[524288]{0}', space=vmem, size = 0x80000, scoped, tag = 'input window, operand 1']
    #allocation7 [shape = 's32[2]{0}', space=sflag, size = 0x8, scoped, tag = 'scoped memory for multi_llama_forward.3']
    %9 = vsyncpa [#allocation7], 0
    %s10 = scalar_lea.sflag [#allocation7], 1
    %11 = vsyncpa %s10, 0
    loop: start=0, step=1, limit=4
    $region2: #{multi_llama_forward.3} parent=1 // loop_pre_header
      _
    $region3: #{multi_llama_forward.3} parent=1 // loop_header
      %s13 = sphi 0, %s17
      %p14 = scmp.ge.s32.totalorder %s13, 4
      %s20 = sphi 0, %s32
      %s21 = sphi 0, %s28
      %s22 = sphi 0, %s20
      %s23 = sphi 0, %s21
      %s24 = sphi 0, %s22
      %s25 = sphi 0, %s23
      %s35 = sphi 0, %s37
      %s38 = sphi 0, %s35
      %s39 = sphi 0, %s38
      %s55 = sphi 0, %s39
      %s61 = sphi 0, %s63
      %s64 = sphi 0, %s61
      %s65 = sphi 0, %s64
      %s81 = sphi 0, %s65
      %s87 = sphi 0, %s89
      %s90 = sphi 0, %s87
      %s91 = sphi 0, %s90
      %s107 = sphi 0, %s91
      %s113 = sphi 0, %s115
      %s116 = sphi 0, %s113
      %s117 = sphi 0, %s116
      %s133 = sphi 0, %s117
      %s139 = sphi 0, %s141
      %s142 = sphi 0, %s139
      %s143 = sphi 0, %s142
      %s159 = sphi 0, %s143
    $region4: #{multi_llama_forward.3} parent=1 // loop_header_branch
      %16 = sbr.rel (%p14) target = $region8
    $region5: #{multi_llama_forward.3} parent=1 // loop_body
      %s18 = ssub.s32 %s13, 1
      %s19 = ssub.s32 %s13, 2
      %s26 = sadd.s32 1, %s21
      %p27 = scmp.ge.s32.totalorder %s26, 2
      %s28 = scalar_select %p27, 0, %s26
      %s29 = sadd.s32 1, %s20
      %s30 = scalar_select %p27, %s29, %s20
      %p31 = scmp.ge.s32.totalorder %s30, 1
      %s32 = scalar_select %p31, 0, %s30
      %s33 = ssub.s32 %s20, %s32
      %p34 = scmp.eq.s32.totalorder %s33, 0
      %s36 = sadd.s32 %s35, 1
      %s37 = scalar_select %p34, %s35, %s36
      %p40 = pneg %p34
      %p41 = scmp.eq.s32.totalorder %s13, 1
      %p42 = por %p40, %p41
      %p43 = scmp.ne.s32.totalorder %s35, %s38
      %p44 = scmp.eq.s32.totalorder %s13, 0
      %p45 = por %p43, %p44
      %p46 = scmp.ne.s32.totalorder %s35, %s38
      %p47 = scmp.eq.s32.totalorder %s18, 1
      %p48 = por %p46, %p47
      %p49 = scmp.ne.s32.totalorder %s38, %s39
      %p50 = scmp.eq.s32.totalorder %s18, 0
      %p51 = por %p49, %p50
      %p52 = scmp.ne.s32.totalorder %s38, %s39
      %p53 = scmp.eq.s32.totalorder %s19, 1
      %p54 = por %p52, %p53
      %p56 = scmp.ne.s32.totalorder %s39, %s55
      %p57 = scmp.eq.s32.totalorder %s19, 0
      %p58 = por %p56, %p57
      %s59 = ssub.s32 %s21, %s28
      %p60 = scmp.eq.s32.totalorder %s59, 0
      %s62 = sadd.s32 %s61, 1
      %s63 = scalar_select %p60, %s61, %s62
      %p66 = pneg %p60
      %p67 = scmp.eq.s32.totalorder %s13, 1
      %p68 = por %p66, %p67
      %p69 = scmp.ne.s32.totalorder %s61, %s64
      %p70 = scmp.eq.s32.totalorder %s13, 0
      %p71 = por %p69, %p70
      %p72 = scmp.ne.s32.totalorder %s61, %s64
      %p73 = scmp.eq.s32.totalorder %s18, 1
      %p74 = por %p72, %p73
      %p75 = scmp.ne.s32.totalorder %s64, %s65
      %p76 = scmp.eq.s32.totalorder %s18, 0
      %p77 = por %p75, %p76
      %p78 = scmp.ne.s32.totalorder %s64, %s65
      %p79 = scmp.eq.s32.totalorder %s19, 1
      %p80 = por %p78, %p79
      %p82 = scmp.ne.s32.totalorder %s65, %s81
      %p83 = scmp.eq.s32.totalorder %s19, 0
      %p84 = por %p82, %p83
      %s85 = ssub.s32 %s20, %s32
      %p86 = scmp.eq.s32.totalorder %s85, 0
      %s88 = sadd.s32 %s87, 1
      %s89 = scalar_select %p86, %s87, %s88
      %p92 = pneg %p86
      %p93 = scmp.eq.s32.totalorder %s13, 1
      %p94 = por %p92, %p93
      %p95 = scmp.ne.s32.totalorder %s87, %s90
      %p96 = scmp.eq.s32.totalorder %s13, 0
      %p97 = por %p95, %p96
      %p98 = scmp.ne.s32.totalorder %s87, %s90
      %p99 = scmp.eq.s32.totalorder %s18, 1
      %p100 = por %p98, %p99
      %p101 = scmp.ne.s32.totalorder %s90, %s91
      %p102 = scmp.eq.s32.totalorder %s18, 0
      %p103 = por %p101, %p102
      %p104 = scmp.ne.s32.totalorder %s90, %s91
      %p105 = scmp.eq.s32.totalorder %s19, 1
      %p106 = por %p104, %p105
      %p108 = scmp.ne.s32.totalorder %s91, %s107
      %p109 = scmp.eq.s32.totalorder %s19, 0
      %p110 = por %p108, %p109
      %s111 = ssub.s32 %s20, %s32
      %p112 = scmp.eq.s32.totalorder %s111, 0
      %s114 = sadd.s32 %s113, 1
      %s115 = scalar_select %p112, %s113, %s114
      %p118 = pneg %p112
      %p119 = scmp.eq.s32.totalorder %s13, 1
      %p120 = por %p118, %p119
      %p121 = scmp.ne.s32.totalorder %s113, %s116
      %p122 = scmp.eq.s32.totalorder %s13, 0
      %p123 = por %p121, %p122
      %p124 = scmp.ne.s32.totalorder %s113, %s116
      %p125 = scmp.eq.s32.totalorder %s18, 1
      %p126 = por %p124, %p125
      %p127 = scmp.ne.s32.totalorder %s116, %s117
      %p128 = scmp.eq.s32.totalorder %s18, 0
      %p129 = por %p127, %p128
      %p130 = scmp.ne.s32.totalorder %s116, %s117
      %p131 = scmp.eq.s32.totalorder %s19, 1
      %p132 = por %p130, %p131
      %p134 = scmp.ne.s32.totalorder %s117, %s133
      %p135 = scmp.eq.s32.totalorder %s19, 0
      %p136 = por %p134, %p135
      %s137 = ssub.s32 %s20, %s32
      %p138 = scmp.eq.s32.totalorder %s137, 0
      %s140 = sadd.s32 %s139, 1
      %s141 = scalar_select %p138, %s139, %s140
      %p144 = pneg %p138
      %p145 = scmp.eq.s32.totalorder %s13, 1
      %p146 = por %p144, %p145
      %p147 = scmp.ne.s32.totalorder %s139, %s142
      %p148 = scmp.eq.s32.totalorder %s13, 0
      %p149 = por %p147, %p148
      %p150 = scmp.ne.s32.totalorder %s139, %s142
      %p151 = scmp.eq.s32.totalorder %s18, 1
      %p152 = por %p150, %p151
      %p153 = scmp.ne.s32.totalorder %s142, %s143
      %p154 = scmp.eq.s32.totalorder %s18, 0
      %p155 = por %p153, %p154
      %p156 = scmp.ne.s32.totalorder %s142, %s143
      %p157 = scmp.eq.s32.totalorder %s19, 1
      %p158 = por %p156, %p157
      %p160 = scmp.ne.s32.totalorder %s143, %s159
      %p161 = scmp.eq.s32.totalorder %s19, 0
      %p162 = por %p160, %p161
      %p163 = scmp.le.s32.totalorder 1, %s13
      %p164 = scmp.lt.s32.totalorder %s13, 3
      %p165 = pnand %p163, %p164
      %p166 = pneg %p165
      // Predicated region
      $region9: #{multi_llama_forward.3} parent=5 // pred_check
        _
      $region10: #{multi_llama_forward.3} parent=5 // pred_check_branch
        %168 = sbr.rel (%p165) target = $region12
      $region11: #{multi_llama_forward.3} parent=5 // pred_region
        %s169 = ssub.s32 %s13, 1
        // Predicated region
        $region13: #{multi_llama_forward.3} parent=11 // pred_check
          %p170 = pneg %p51
        $region14: #{multi_llama_forward.3} parent=11 // pred_check_branch
          %172 = sbr.rel (%p170) target = $region16
        $region15: #{multi_llama_forward.3} parent=11 // pred_region
          %s173 = smul.u32 4, %s22
          %p174 = scmp.lt.s32.totalorder %s173, 3
          %s175 = scalar_select %p174, %s173, 3
          %s176 = smul.addr %s175, 4
          %s177 = scalar_lea.vmem %s0, %s176
          %s178 = smul.u32 4, %s22
        $region16: #{multi_llama_forward.3} parent=11 // pred_fallthru
          _
        // Predicated region
        $region17: #{multi_llama_forward.3} parent=11 // pred_check
          %p179 = pneg %p103
        $region18: #{multi_llama_forward.3} parent=11 // pred_check_branch
          %181 = sbr.rel (%p179) target = $region20
        $region19: #{multi_llama_forward.3} parent=11 // pred_region
          %s182 = smul.u32 4, %s22
          %p183 = scmp.lt.s32.totalorder %s182, 3
          %s184 = scalar_select %p183, %s182, 3
          %s185 = smul.addr %s184, 8
          %s186 = scalar_lea.vmem %s2, %s185
          %s187 = smul.u32 4, %s22
        $region20: #{multi_llama_forward.3} parent=11 // pred_fallthru
          _
        // Predicated region
        $region21: #{multi_llama_forward.3} parent=11 // pred_check
          %p188 = pneg %p129
        $region22: #{multi_llama_forward.3} parent=11 // pred_check_branch
          %190 = sbr.rel (%p188) target = $region24
        $region23: #{multi_llama_forward.3} parent=11 // pred_region
          %s191 = smul.u32 4, %s22
          %p192 = scmp.lt.s32.totalorder %s191, 3
          %s193 = scalar_select %p192, %s191, 3
          %s194 = smul.addr %s193, 8
          %s195 = scalar_lea.vmem %s3, %s194
          %s196 = smul.u32 4, %s22
        $region24: #{multi_llama_forward.3} parent=11 // pred_fallthru
          _
      $region12: #{multi_llama_forward.3} parent=5 // pred_fallthru
        _
      %p197 = scmp.lt.s32.totalorder %s13, 2
      // Predicated region
      $region25: #{multi_llama_forward.3} parent=5 // pred_check
        %p198 = pneg %p197
      $region26: #{multi_llama_forward.3} parent=5 // pred_check_branch
        %200 = sbr.rel (%p198) target = $region28
      $region27: #{multi_llama_forward.3} parent=5 // pred_region
        // Predicated region
        $region29: #{multi_llama_forward.3} parent=27 // pred_check
          %p201 = pneg %p71
        $region30: #{multi_llama_forward.3} parent=27 // pred_check_branch
          %203 = sbr.rel (%p201) target = $region32
        $region31: #{multi_llama_forward.3} parent=27 // pred_region
          %s204 = sand.u32 %s61, 1
          %s205 = scalar_lea.sflag [#allocation7], %s204
          %s206 = sand.u32 %s61, 1
          %s207 = smul.addr %s206, 512
          %s208 = scalar_lea.vmem [#allocation6], %s207
          %s209 = smul.u32 128, %s21
          %s211 = ssub.s32 8192, 8192
          %212 = vsyncadd %s205, %s211
          %s213 = smul.addr %s209, 64
          %s214 = scalar_lea.hbm %s1, %s213
          %s215 = sshll.u32 %s208, 4
          %s216 = int_to_ptr.vmem [resolvable:$true] %s215
          %221 = dma.hbm_to_vmem [thread:$0]  %s214, 8192, %s216, %s205, 64, 64, 4
        $region32: #{multi_llama_forward.3} parent=27 // pred_fallthru
          _
      $region28: #{multi_llama_forward.3} parent=5 // pred_fallthru
        _
      %p222 = scmp.le.s32.totalorder 1, %s13
      %p223 = scmp.lt.s32.totalorder %s13, 3
      %p224 = pnand %p222, %p223
      %p225 = pneg %p224
      // Predicated region
      $region33: #{multi_llama_forward.3} parent=5 // pred_check
        _
      $region34: #{multi_llama_forward.3} parent=5 // pred_check_branch
        %227 = sbr.rel (%p224) target = $region36
      $region35: #{multi_llama_forward.3} parent=5 // pred_region
        %s228 = ssub.s32 %s13, 1
        %s229 = sand.u32 %s64, 1
        %s230 = scalar_lea.sflag [#allocation7], %s229
        %s231 = sand.u32 %s64, 1
        %s232 = smul.addr %s231, 512
        %s233 = scalar_lea.vmem [#allocation6], %s232
        // Predicated region
        $region37: #{multi_llama_forward.3} parent=35 // pred_check
          %p234 = pneg %p77
        $region38: #{multi_llama_forward.3} parent=35 // pred_check_branch
          %236 = sbr.rel (%p234) target = $region40
        $region39: #{multi_llama_forward.3} parent=35 // pred_region
          %237 = dma.done %s230, 8192
        $region40: #{multi_llama_forward.3} parent=35 // pred_fallthru
          _
        %s238 = smul.u32 4, %s22
        %p239 = scmp.lt.s32.totalorder %s238, 3
        %s240 = scalar_select %p239, %s238, 3
        %s241 = smul.addr %s240, 4
        %s242 = scalar_lea.vmem %s0, %s241
        %p243 = pneg %p51
        %p244 = pneg %p48
        %s245 = sand.u32 %s64, 1
        %s246 = scalar_lea.sflag [#allocation7], %s245
        %s247 = sand.u32 %s64, 1
        %s248 = smul.addr %s247, 512
        %s249 = scalar_lea.vmem [#allocation6], %s248
        %p250 = pneg %p77
        %p251 = pneg %p74
        %s252 = smul.u32 4, %s22
        %p253 = scmp.lt.s32.totalorder %s252, 3
        %s254 = scalar_select %p253, %s252, 3
        %s255 = smul.addr %s254, 8
        %s256 = scalar_lea.vmem %s2, %s255
        %p257 = pneg %p103
        %p258 = pneg %p100
        %s259 = smul.u32 4, %s22
        %p260 = scmp.lt.s32.totalorder %s259, 3
        %s261 = scalar_select %p260, %s259, 3
        %s262 = smul.addr %s261, 8
        %s263 = scalar_lea.vmem %s3, %s262
        %p264 = pneg %p129
        %p265 = pneg %p126
        %p266 = pneg %p155
        %p267 = pneg %p152
        %s268 = smul.u32 4, %s22
        %p269 = scmp.lt.s32.totalorder %s268, 3
        %s270 = scalar_select %p269, %s268, 3
        %s271 = smul.addr %s270, 8
        %s272 = scalar_lea.vmem %s4, %s271
        %s273 = smul.u32 4, %s22
        %p274 = scmp.lt.s32.totalorder %s273, 3
        %s275 = scalar_select %p274, %s273, 3
        %s276 = smul.addr %s275, 4
        %s277 = scalar_lea.vmem %s0, %s276
        %s278 = smul.u32 4, %s22
        %s279 = smul.u32 128, %s23
        %s280 = smul.u32 4, %s22
        %p281 = scmp.lt.s32.totalorder %s280, 3
        %s282 = scalar_select %p281, %s280, 3
        %s283 = smul.addr %s282, 8
        %s284 = scalar_lea.vmem %s2, %s283
        %s285 = smul.u32 4, %s22
        %s286 = smul.u32 4, %s22
        %p287 = scmp.lt.s32.totalorder %s286, 3
        %s288 = scalar_select %p287, %s286, 3
        %s289 = smul.addr %s288, 8
        %s290 = scalar_lea.vmem %s3, %s289
        %s291 = smul.u32 4, %s22
        %s292 = smul.u32 4, %s22
        %p293 = scmp.lt.s32.totalorder %s292, 3
        %s294 = scalar_select %p293, %s292, 3
        %s295 = smul.addr %s294, 8
        %s296 = scalar_lea.vmem %s4, %s295
        %s297 = smul.u32 4, %s22
        %p299 = scmp.eq.s32.totalorder %s23, 0
        // Predicated region
        $region41: #{multi_llama_forward.3} parent=35 // pred_check
          %p300 = pneg %p299
        $region42: #{multi_llama_forward.3} parent=35 // pred_check_branch
          %302 = sbr.rel (%p300) target = $region44
        $region43: #{multi_llama_forward.3} parent=35 // pred_region
          %vm303 = vcmask 7168
          %304 = vst.msk [vmem:[#allocation2] sm:$0xff] %vm303, -inf
          %305 = vst.msk [vmem:[#allocation2 + $0x8] sm:$0xff] %vm303, -inf
          %306 = vst.msk [vmem:[#allocation2 + $0x10] sm:$0xff] %vm303, -inf
          %307 = vst.msk [vmem:[#allocation2 + $0x18] sm:$0xff] %vm303, -inf
          %308 = vst.msk [vmem:[#allocation3] sm:$0xff] %vm303, 0.0
          %309 = vst.msk [vmem:[#allocation3 + $0x8] sm:$0xff] %vm303, 0.0
          %310 = vst.msk [vmem:[#allocation3 + $0x10] sm:$0xff] %vm303, 0.0
          %311 = vst.msk [vmem:[#allocation3 + $0x18] sm:$0xff] %vm303, 0.0
          %312 = vst.msk [vmem:[#allocation4] sm:$0xff] %vm303, 0.0
          %313 = vst.msk [vmem:[#allocation4 + $0x8] sm:$0xff] %vm303, 0.0
          %314 = vst.msk [vmem:[#allocation4 + $0x10] sm:$0xff] %vm303, 0.0
          %315 = vst.msk [vmem:[#allocation4 + $0x18] sm:$0xff] %vm303, 0.0
          %316 = vst.msk [vmem:[#allocation5] sm:$0xff] %vm303, 0
          %317 = vst.msk [vmem:[#allocation5 + $0x8] sm:$0xff] %vm303, 0
          %318 = vst.msk [vmem:[#allocation5 + $0x10] sm:$0xff] %vm303, 0
          %319 = vst.msk [vmem:[#allocation5 + $0x18] sm:$0xff] %vm303, 0
        $region44: #{multi_llama_forward.3} parent=35 // pred_fallthru
          _
        %v320 = vld [vmem:[%s284] sm:$0xff]
        %v321 = vld [vmem:[%s284 + $0x8] sm:$0xff]
        %v322 = vld [vmem:[%s284 + $0x10] sm:$0xff]
        %v323 = vld [vmem:[%s284 + $0x18] sm:$0xff]
        %v324 = vld [vmem:[%s277] sm:$0xf]
        %v325 = vld [vmem:[%s277 + $0x4] sm:$0xf]
        %v326 = vld [vmem:[%s277 + $0x8] sm:$0xf]
        %v327 = vld [vmem:[%s277 + $0xc] sm:$0xf]
        %v328 = vld [vmem:[%s233] sm:$0xf]
        %v329 = vld [vmem:[%s233 + $0x4] sm:$0xf]
        %v330 = vld [vmem:[%s233 + $0x8] sm:$0xf]
        %v331 = vld [vmem:[%s233 + $0xc] sm:$0xf]
        %v332 = vld [vmem:[%s233 + $0x10] sm:$0xf]
        %v333 = vld [vmem:[%s233 + $0x14] sm:$0xf]
        %v334 = vld [vmem:[%s233 + $0x18] sm:$0xf]
        %v335 = vld [vmem:[%s233 + $0x1c] sm:$0xf]
        %v336 = vld [vmem:[%s233 + $0x20] sm:$0xf]
        %v337 = vld [vmem:[%s233 + $0x24] sm:$0xf]
        %v338 = vld [vmem:[%s233 + $0x28] sm:$0xf]
        %v339 = vld [vmem:[%s233 + $0x2c] sm:$0xf]
        %v340 = vld [vmem:[%s233 + $0x30] sm:$0xf]
        %v341 = vld [vmem:[%s233 + $0x34] sm:$0xf]
        %v342 = vld [vmem:[%s233 + $0x38] sm:$0xf]
        %v343 = vld [vmem:[%s233 + $0x3c] sm:$0xf]
        %v344 = vld [vmem:[%s233 + $0x40] sm:$0xf]
        %v345 = vld [vmem:[%s233 + $0x44] sm:$0xf]
        %v346 = vld [vmem:[%s233 + $0x48] sm:$0xf]
        %v347 = vld [vmem:[%s233 + $0x4c] sm:$0xf]
        %v348 = vld [vmem:[%s233 + $0x50] sm:$0xf]
        %v349 = vld [vmem:[%s233 + $0x54] sm:$0xf]
        %v350 = vld [vmem:[%s233 + $0x58] sm:$0xf]
        %v351 = vld [vmem:[%s233 + $0x5c] sm:$0xf]
        %v352 = vld [vmem:[%s233 + $0x60] sm:$0xf]
        %v353 = vld [vmem:[%s233 + $0x64] sm:$0xf]
        %v354 = vld [vmem:[%s233 + $0x68] sm:$0xf]
        %v355 = vld [vmem:[%s233 + $0x6c] sm:$0xf]
        %v356 = vld [vmem:[%s233 + $0x70] sm:$0xf]
        %v357 = vld [vmem:[%s233 + $0x74] sm:$0xf]
        %v358 = vld [vmem:[%s233 + $0x78] sm:$0xf]
        %v359 = vld [vmem:[%s233 + $0x7c] sm:$0xf]
        %v360 = vld [vmem:[%s233 + $0x80] sm:$0xf]
        %v361 = vld [vmem:[%s233 + $0x84] sm:$0xf]
        %v362 = vld [vmem:[%s233 + $0x88] sm:$0xf]
        %v363 = vld [vmem:[%s233 + $0x8c] sm:$0xf]
        %v364 = vld [vmem:[%s233 + $0x90] sm:$0xf]
        %v365 = vld [vmem:[%s233 + $0x94] sm:$0xf]
        %v366 = vld [vmem:[%s233 + $0x98] sm:$0xf]
        %v367 = vld [vmem:[%s233 + $0x9c] sm:$0xf]
        %v368 = vld [vmem:[%s233 + $0xa0] sm:$0xf]
        %v369 = vld [vmem:[%s233 + $0xa4] sm:$0xf]
        %v370 = vld [vmem:[%s233 + $0xa8] sm:$0xf]
        %v371 = vld [vmem:[%s233 + $0xac] sm:$0xf]
        %v372 = vld [vmem:[%s233 + $0xb0] sm:$0xf]
        %v373 = vld [vmem:[%s233 + $0xb4] sm:$0xf]
        %v374 = vld [vmem:[%s233 + $0xb8] sm:$0xf]
        %v375 = vld [vmem:[%s233 + $0xbc] sm:$0xf]
        %v376 = vld [vmem:[%s233 + $0xc0] sm:$0xf]
        %v377 = vld [vmem:[%s233 + $0xc4] sm:$0xf]
        %v378 = vld [vmem:[%s233 + $0xc8] sm:$0xf]
        %v379 = vld [vmem:[%s233 + $0xcc] sm:$0xf]
        %v380 = vld [vmem:[%s233 + $0xd0] sm:$0xf]
        %v381 = vld [vmem:[%s233 + $0xd4] sm:$0xf]
        %v382 = vld [vmem:[%s233 + $0xd8] sm:$0xf]
        %v383 = vld [vmem:[%s233 + $0xdc] sm:$0xf]
        %v384 = vld [vmem:[%s233 + $0xe0] sm:$0xf]
        %v385 = vld [vmem:[%s233 + $0xe4] sm:$0xf]
        %v386 = vld [vmem:[%s233 + $0xe8] sm:$0xf]
        %v387 = vld [vmem:[%s233 + $0xec] sm:$0xf]
        %v388 = vld [vmem:[%s233 + $0xf0] sm:$0xf]
        %v389 = vld [vmem:[%s233 + $0xf4] sm:$0xf]
        %v390 = vld [vmem:[%s233 + $0xf8] sm:$0xf]
        %v391 = vld [vmem:[%s233 + $0xfc] sm:$0xf]
        %v392 = vld [vmem:[%s233 + $0x100] sm:$0xf]
        %v393 = vld [vmem:[%s233 + $0x104] sm:$0xf]
        %v394 = vld [vmem:[%s233 + $0x108] sm:$0xf]
        %v395 = vld [vmem:[%s233 + $0x10c] sm:$0xf]
        %v396 = vld [vmem:[%s233 + $0x110] sm:$0xf]
        %v397 = vld [vmem:[%s233 + $0x114] sm:$0xf]
        %v398 = vld [vmem:[%s233 + $0x118] sm:$0xf]
        %v399 = vld [vmem:[%s233 + $0x11c] sm:$0xf]
        %v400 = vld [vmem:[%s233 + $0x120] sm:$0xf]
        %v401 = vld [vmem:[%s233 + $0x124] sm:$0xf]
        %v402 = vld [vmem:[%s233 + $0x128] sm:$0xf]
        %v403 = vld [vmem:[%s233 + $0x12c] sm:$0xf]
        %v404 = vld [vmem:[%s233 + $0x130] sm:$0xf]
        %v405 = vld [vmem:[%s233 + $0x134] sm:$0xf]
        %v406 = vld [vmem:[%s233 + $0x138] sm:$0xf]
        %v407 = vld [vmem:[%s233 + $0x13c] sm:$0xf]
        %v408 = vld [vmem:[%s233 + $0x140] sm:$0xf]
        %v409 = vld [vmem:[%s233 + $0x144] sm:$0xf]
        %v410 = vld [vmem:[%s233 + $0x148] sm:$0xf]
        %v411 = vld [vmem:[%s233 + $0x14c] sm:$0xf]
        %v412 = vld [vmem:[%s233 + $0x150] sm:$0xf]
        %v413 = vld [vmem:[%s233 + $0x154] sm:$0xf]
        %v414 = vld [vmem:[%s233 + $0x158] sm:$0xf]
        %v415 = vld [vmem:[%s233 + $0x15c] sm:$0xf]
        %v416 = vld [vmem:[%s233 + $0x160] sm:$0xf]
        %v417 = vld [vmem:[%s233 + $0x164] sm:$0xf]
        %v418 = vld [vmem:[%s233 + $0x168] sm:$0xf]
        %v419 = vld [vmem:[%s233 + $0x16c] sm:$0xf]
        %v420 = vld [vmem:[%s233 + $0x170] sm:$0xf]
        %v421 = vld [vmem:[%s233 + $0x174] sm:$0xf]
        %v422 = vld [vmem:[%s233 + $0x178] sm:$0xf]
        %v423 = vld [vmem:[%s233 + $0x17c] sm:$0xf]
        %v424 = vld [vmem:[%s233 + $0x180] sm:$0xf]
        %v425 = vld [vmem:[%s233 + $0x184] sm:$0xf]
        %v426 = vld [vmem:[%s233 + $0x188] sm:$0xf]
        %v427 = vld [vmem:[%s233 + $0x18c] sm:$0xf]
        %v428 = vld [vmem:[%s233 + $0x190] sm:$0xf]
        %v429 = vld [vmem:[%s233 + $0x194] sm:$0xf]
        %v430 = vld [vmem:[%s233 + $0x198] sm:$0xf]
        %v431 = vld [vmem:[%s233 + $0x19c] sm:$0xf]
        %v432 = vld [vmem:[%s233 + $0x1a0] sm:$0xf]
        %v433 = vld [vmem:[%s233 + $0x1a4] sm:$0xf]
        %v434 = vld [vmem:[%s233 + $0x1a8] sm:$0xf]
        %v435 = vld [vmem:[%s233 + $0x1ac] sm:$0xf]
        %v436 = vld [vmem:[%s233 + $0x1b0] sm:$0xf]
        %v437 = vld [vmem:[%s233 + $0x1b4] sm:$0xf]
        %v438 = vld [vmem:[%s233 + $0x1b8] sm:$0xf]
        %v439 = vld [vmem:[%s233 + $0x1bc] sm:$0xf]
        %v440 = vld [vmem:[%s233 + $0x1c0] sm:$0xf]
        %v441 = vld [vmem:[%s233 + $0x1c4] sm:$0xf]
        %v442 = vld [vmem:[%s233 + $0x1c8] sm:$0xf]
        %v443 = vld [vmem:[%s233 + $0x1cc] sm:$0xf]
        %v444 = vld [vmem:[%s233 + $0x1d0] sm:$0xf]
        %v445 = vld [vmem:[%s233 + $0x1d4] sm:$0xf]
        %v446 = vld [vmem:[%s233 + $0x1d8] sm:$0xf]
        %v447 = vld [vmem:[%s233 + $0x1dc] sm:$0xf]
        %v448 = vld [vmem:[%s233 + $0x1e0] sm:$0xf]
        %v449 = vld [vmem:[%s233 + $0x1e4] sm:$0xf]
        %v450 = vld [vmem:[%s233 + $0x1e8] sm:$0xf]
        %v451 = vld [vmem:[%s233 + $0x1ec] sm:$0xf]
        %v452 = vld [vmem:[%s233 + $0x1f0] sm:$0xf]
        %v453 = vld [vmem:[%s233 + $0x1f4] sm:$0xf]
        %v454 = vld [vmem:[%s233 + $0x1f8] sm:$0xf]
        %v455 = vld [vmem:[%s233 + $0x1fc] sm:$0xf]
        %v460 = vunpack.c.l.b16 %v324
        %v461 = vunpack.c.l.b16 %v325
        %v462 = vunpack.c.l.b16 %v326
        %v463 = vunpack.c.l.b16 %v327
        %v464 = vpack.c.b16 %v461, %v460
        %v465 = vpack.c.b16 %v463, %v462
        %v596 = vunpack.c.l.b16 %v328
        %v597 = vunpack.c.l.b16 %v329
        %v598 = vunpack.c.l.b16 %v330
        %v599 = vunpack.c.l.b16 %v331
        %v600 = vunpack.c.l.b16 %v332
        %v601 = vunpack.c.l.b16 %v333
        %v602 = vunpack.c.l.b16 %v334
        %v603 = vunpack.c.l.b16 %v335
        %v604 = vunpack.c.l.b16 %v336
        %v605 = vunpack.c.l.b16 %v337
        %v606 = vunpack.c.l.b16 %v338
        %v607 = vunpack.c.l.b16 %v339
        %v608 = vunpack.c.l.b16 %v340
        %v609 = vunpack.c.l.b16 %v341
        %v610 = vunpack.c.l.b16 %v342
        %v611 = vunpack.c.l.b16 %v343
        %v612 = vunpack.c.l.b16 %v344
        %v613 = vunpack.c.l.b16 %v345
        %v614 = vunpack.c.l.b16 %v346
        %v615 = vunpack.c.l.b16 %v347
        %v616 = vunpack.c.l.b16 %v348
        %v617 = vunpack.c.l.b16 %v349
        %v618 = vunpack.c.l.b16 %v350
        %v619 = vunpack.c.l.b16 %v351
        %v620 = vunpack.c.l.b16 %v352
        %v621 = vunpack.c.l.b16 %v353
        %v622 = vunpack.c.l.b16 %v354
        %v623 = vunpack.c.l.b16 %v355
        %v624 = vunpack.c.l.b16 %v356
        %v625 = vunpack.c.l.b16 %v357
        %v626 = vunpack.c.l.b16 %v358
        %v627 = vunpack.c.l.b16 %v359
        %v628 = vunpack.c.l.b16 %v360
        %v629 = vunpack.c.l.b16 %v361
        %v630 = vunpack.c.l.b16 %v362
        %v631 = vunpack.c.l.b16 %v363
        %v632 = vunpack.c.l.b16 %v364
        %v633 = vunpack.c.l.b16 %v365
        %v634 = vunpack.c.l.b16 %v366
        %v635 = vunpack.c.l.b16 %v367
        %v636 = vunpack.c.l.b16 %v368
        %v637 = vunpack.c.l.b16 %v369
        %v638 = vunpack.c.l.b16 %v370
        %v639 = vunpack.c.l.b16 %v371
        %v640 = vunpack.c.l.b16 %v372
        %v641 = vunpack.c.l.b16 %v373
        %v642 = vunpack.c.l.b16 %v374
        %v643 = vunpack.c.l.b16 %v375
        %v644 = vunpack.c.l.b16 %v376
        %v645 = vunpack.c.l.b16 %v377
        %v646 = vunpack.c.l.b16 %v378
        %v647 = vunpack.c.l.b16 %v379
        %v648 = vunpack.c.l.b16 %v380
        %v649 = vunpack.c.l.b16 %v381
        %v650 = vunpack.c.l.b16 %v382
        %v651 = vunpack.c.l.b16 %v383
        %v652 = vunpack.c.l.b16 %v384
        %v653 = vunpack.c.l.b16 %v385
        %v654 = vunpack.c.l.b16 %v386
        %v655 = vunpack.c.l.b16 %v387
        %v656 = vunpack.c.l.b16 %v388
        %v657 = vunpack.c.l.b16 %v389
        %v658 = vunpack.c.l.b16 %v390
        %v659 = vunpack.c.l.b16 %v391
        %v660 = vunpack.c.l.b16 %v392
        %v661 = vunpack.c.l.b16 %v393
        %v662 = vunpack.c.l.b16 %v394
        %v663 = vunpack.c.l.b16 %v395
        %v664 = vunpack.c.l.b16 %v396
        %v665 = vunpack.c.l.b16 %v397
        %v666 = vunpack.c.l.b16 %v398
        %v667 = vunpack.c.l.b16 %v399
        %v668 = vunpack.c.l.b16 %v400
        %v669 = vunpack.c.l.b16 %v401
        %v670 = vunpack.c.l.b16 %v402
        %v671 = vunpack.c.l.b16 %v403
        %v672 = vunpack.c.l.b16 %v404
        %v673 = vunpack.c.l.b16 %v405
        %v674 = vunpack.c.l.b16 %v406
        %v675 = vunpack.c.l.b16 %v407
        %v676 = vunpack.c.l.b16 %v408
        %v677 = vunpack.c.l.b16 %v409
        %v678 = vunpack.c.l.b16 %v410
        %v679 = vunpack.c.l.b16 %v411
        %v680 = vunpack.c.l.b16 %v412
        %v681 = vunpack.c.l.b16 %v413
        %v682 = vunpack.c.l.b16 %v414
        %v683 = vunpack.c.l.b16 %v415
        %v684 = vunpack.c.l.b16 %v416
        %v685 = vunpack.c.l.b16 %v417
        %v686 = vunpack.c.l.b16 %v418
        %v687 = vunpack.c.l.b16 %v419
        %v688 = vunpack.c.l.b16 %v420
        %v689 = vunpack.c.l.b16 %v421
        %v690 = vunpack.c.l.b16 %v422
        %v691 = vunpack.c.l.b16 %v423
        %v692 = vunpack.c.l.b16 %v424
        %v693 = vunpack.c.l.b16 %v425
        %v694 = vunpack.c.l.b16 %v426
        %v695 = vunpack.c.l.b16 %v427
        %v696 = vunpack.c.l.b16 %v428
        %v697 = vunpack.c.l.b16 %v429
        %v698 = vunpack.c.l.b16 %v430
        %v699 = vunpack.c.l.b16 %v431
        %v700 = vunpack.c.l.b16 %v432
        %v701 = vunpack.c.l.b16 %v433
        %v702 = vunpack.c.l.b16 %v434
        %v703 = vunpack.c.l.b16 %v435
        %v704 = vunpack.c.l.b16 %v436
        %v705 = vunpack.c.l.b16 %v437
        %v706 = vunpack.c.l.b16 %v438
        %v707 = vunpack.c.l.b16 %v439
        %v708 = vunpack.c.l.b16 %v440
        %v709 = vunpack.c.l.b16 %v441
        %v710 = vunpack.c.l.b16 %v442
        %v711 = vunpack.c.l.b16 %v443
        %v712 = vunpack.c.l.b16 %v444
        %v713 = vunpack.c.l.b16 %v445
        %v714 = vunpack.c.l.b16 %v446
        %v715 = vunpack.c.l.b16 %v447
        %v716 = vunpack.c.l.b16 %v448
        %v717 = vunpack.c.l.b16 %v449
        %v718 = vunpack.c.l.b16 %v450
        %v719 = vunpack.c.l.b16 %v451
        %v720 = vunpack.c.l.b16 %v452
        %v721 = vunpack.c.l.b16 %v453
        %v722 = vunpack.c.l.b16 %v454
        %v723 = vunpack.c.l.b16 %v455
        %v724 = vpack.c.b16 %v597, %v596
        %v725 = vpack.c.b16 %v599, %v598
        %v726 = vpack.c.b16 %v601, %v600
        %v727 = vpack.c.b16 %v603, %v602
        %v728 = vpack.c.b16 %v605, %v604
        %v729 = vpack.c.b16 %v607, %v606
        %v730 = vpack.c.b16 %v609, %v608
        %v731 = vpack.c.b16 %v611, %v610
        %v732 = vpack.c.b16 %v613, %v612
        %v733 = vpack.c.b16 %v615, %v614
        %v734 = vpack.c.b16 %v617, %v616
        %v735 = vpack.c.b16 %v619, %v618
        %v736 = vpack.c.b16 %v621, %v620
        %v737 = vpack.c.b16 %v623, %v622
        %v738 = vpack.c.b16 %v625, %v624
        %v739 = vpack.c.b16 %v627, %v626
        %v740 = vpack.c.b16 %v629, %v628
        %v741 = vpack.c.b16 %v631, %v630
        %v742 = vpack.c.b16 %v633, %v632
        %v743 = vpack.c.b16 %v635, %v634
        %v744 = vpack.c.b16 %v637, %v636
        %v745 = vpack.c.b16 %v639, %v638
        %v746 = vpack.c.b16 %v641, %v640
        %v747 = vpack.c.b16 %v643, %v642
        %v748 = vpack.c.b16 %v645, %v644
        %v749 = vpack.c.b16 %v647, %v646
        %v750 = vpack.c.b16 %v649, %v648
        %v751 = vpack.c.b16 %v651, %v650
        %v752 = vpack.c.b16 %v653, %v652
        %v753 = vpack.c.b16 %v655, %v654
        %v754 = vpack.c.b16 %v657, %v656
        %v755 = vpack.c.b16 %v659, %v658
        %v756 = vpack.c.b16 %v661, %v660
        %v757 = vpack.c.b16 %v663, %v662
        %v758 = vpack.c.b16 %v665, %v664
        %v759 = vpack.c.b16 %v667, %v666
        %v760 = vpack.c.b16 %v669, %v668
        %v761 = vpack.c.b16 %v671, %v670
        %v762 = vpack.c.b16 %v673, %v672
        %v763 = vpack.c.b16 %v675, %v674
        %v764 = vpack.c.b16 %v677, %v676
        %v765 = vpack.c.b16 %v679, %v678
        %v766 = vpack.c.b16 %v681, %v680
        %v767 = vpack.c.b16 %v683, %v682
        %v768 = vpack.c.b16 %v685, %v684
        %v769 = vpack.c.b16 %v687, %v686
        %v770 = vpack.c.b16 %v689, %v688
        %v771 = vpack.c.b16 %v691, %v690
        %v772 = vpack.c.b16 %v693, %v692
        %v773 = vpack.c.b16 %v695, %v694
        %v774 = vpack.c.b16 %v697, %v696
        %v775 = vpack.c.b16 %v699, %v698
        %v776 = vpack.c.b16 %v701, %v700
        %v777 = vpack.c.b16 %v703, %v702
        %v778 = vpack.c.b16 %v705, %v704
        %v779 = vpack.c.b16 %v707, %v706
        %v780 = vpack.c.b16 %v709, %v708
        %v781 = vpack.c.b16 %v711, %v710
        %v782 = vpack.c.b16 %v713, %v712
        %v783 = vpack.c.b16 %v715, %v714
        %v784 = vpack.c.b16 %v717, %v716
        %v785 = vpack.c.b16 %v719, %v718
        %v786 = vpack.c.b16 %v721, %v720
        %v787 = vpack.c.b16 %v723, %v722
        %852 = vmatprep.subr.bf16.mxu0 0
        %853 = vmatpush1.bf16.xpose.msra.mxu0 %v724
        %854 = vmatprep.subr.bf16.mxu0 0
        %855 = vmatpush1.bf16.xpose.msra.mxu0 %v725
        %856 = vmatprep.subr.bf16.mxu0 0
        %857 = vmatpush1.bf16.xpose.msra.mxu0 %v726
        %858 = vmatprep.subr.bf16.mxu0 0
        %859 = vmatpush1.bf16.xpose.msra.mxu0 %v727
        %860 = vmatprep.subr.bf16.mxu0 0
        %861 = vmatpush1.bf16.xpose.msra.mxu0 %v728
        %862 = vmatprep.subr.bf16.mxu0 0
        %863 = vmatpush1.bf16.xpose.msra.mxu0 %v729
        %864 = vmatprep.subr.bf16.mxu0 0
        %865 = vmatpush1.bf16.xpose.msra.mxu0 %v730
        %866 = vmatprep.subr.bf16.mxu0 0
        %867 = vmatpush1.bf16.xpose.msra.mxu0 %v731
        %868 = vmatprep.subr.bf16.mxu0 0
        %869 = vmatpush1.bf16.xpose.msra.mxu0 %v732
        %870 = vmatprep.subr.bf16.mxu0 0
        %871 = vmatpush1.bf16.xpose.msra.mxu0 %v733
        %872 = vmatprep.subr.bf16.mxu0 0
        %873 = vmatpush1.bf16.xpose.msra.mxu0 %v734
        %874 = vmatprep.subr.bf16.mxu0 0
        %875 = vmatpush1.bf16.xpose.msra.mxu0 %v735
        %876 = vmatprep.subr.bf16.mxu0 0
        %877 = vmatpush1.bf16.xpose.msra.mxu0 %v736
        %878 = vmatprep.subr.bf16.mxu0 0
        %879 = vmatpush1.bf16.xpose.msra.mxu0 %v737
        %880 = vmatprep.subr.bf16.mxu0 0
        %881 = vmatpush1.bf16.xpose.msra.mxu0 %v738
        %882 = vmatprep.subr.bf16.mxu0 0
        %883 = vmatpush1.bf16.xpose.msra.mxu0 %v739
        %884 = vmatprep.mubr.bf16.mxu0 0
        %885 = vmatmul.mubr.bf16.gmra.mrb[0].mxu0 %v464
        %v886 = vpop.f32.mrb[0].mxu0
        %v887 = vadd.f32 0.0, %v886
        %v888 = vpop.f32.mrb[0].mxu0
        %v889 = vadd.f32 0.0, %v888
        %v890 = vpop.f32.mrb[0].mxu0
        %v891 = vadd.f32 0.0, %v890
        %v892 = vpop.f32.mrb[0].mxu0
        %v893 = vadd.f32 0.0, %v892
        %894 = vmatprep.mubr.bf16.mxu0 0
        %895 = vmatmul.mubr.bf16.gmra.mrb[0].mxu0 %v465
        %v896 = vpop.f32.mrb[0].mxu0
        %v897 = vadd.f32 0.0, %v896
        %v898 = vpop.f32.mrb[0].mxu0
        %v899 = vadd.f32 0.0, %v898
        %v900 = vpop.f32.mrb[0].mxu0
        %v901 = vadd.f32 0.0, %v900
        %v902 = vpop.f32.mrb[0].mxu0
        %v903 = vadd.f32 0.0, %v902
        %904 = vdwg.mxu0
        %905 = vmatprep.subr.bf16.mxu0 0
        %906 = vmatpush1.bf16.xpose.msra.mxu0 %v740
        %907 = vmatprep.subr.bf16.mxu0 0
        %908 = vmatpush1.bf16.xpose.msra.mxu0 %v741
        %909 = vmatprep.subr.bf16.mxu0 0
        %910 = vmatpush1.bf16.xpose.msra.mxu0 %v742
        %911 = vmatprep.subr.bf16.mxu0 0
        %912 = vmatpush1.bf16.xpose.msra.mxu0 %v743
        %913 = vmatprep.subr.bf16.mxu0 0
        %914 = vmatpush1.bf16.xpose.msra.mxu0 %v744
        %915 = vmatprep.subr.bf16.mxu0 0
        %916 = vmatpush1.bf16.xpose.msra.mxu0 %v745
        %917 = vmatprep.subr.bf16.mxu0 0
        %918 = vmatpush1.bf16.xpose.msra.mxu0 %v746
        %919 = vmatprep.subr.bf16.mxu0 0
        %920 = vmatpush1.bf16.xpose.msra.mxu0 %v747
        %921 = vmatprep.subr.bf16.mxu0 0
        %922 = vmatpush1.bf16.xpose.msra.mxu0 %v748
        %923 = vmatprep.subr.bf16.mxu0 0
        %924 = vmatpush1.bf16.xpose.msra.mxu0 %v749
        %925 = vmatprep.subr.bf16.mxu0 0
        %926 = vmatpush1.bf16.xpose.msra.mxu0 %v750
        %927 = vmatprep.subr.bf16.mxu0 0
        %928 = vmatpush1.bf16.xpose.msra.mxu0 %v751
        %929 = vmatprep.subr.bf16.mxu0 0
        %930 = vmatpush1.bf16.xpose.msra.mxu0 %v752
        %931 = vmatprep.subr.bf16.mxu0 0
        %932 = vmatpush1.bf16.xpose.msra.mxu0 %v753
        %933 = vmatprep.subr.bf16.mxu0 0
        %934 = vmatpush1.bf16.xpose.msra.mxu0 %v754
        %935 = vmatprep.subr.bf16.mxu0 0
        %936 = vmatpush1.bf16.xpose.msra.mxu0 %v755
        %937 = vmatprep.mubr.bf16.mxu0 0
        %938 = vmatmul.mubr.bf16.gmra.mrb[0].mxu0 %v464
        %v939 = vpop.f32.mrb[0].mxu0
        %v940 = vadd.f32 0.0, %v939
        %v941 = vpop.f32.mrb[0].mxu0
        %v942 = vadd.f32 0.0, %v941
        %v943 = vpop.f32.mrb[0].mxu0
        %v944 = vadd.f32 0.0, %v943
        %v945 = vpop.f32.mrb[0].mxu0
        %v946 = vadd.f32 0.0, %v945
        %947 = vmatprep.mubr.bf16.mxu0 0
        %948 = vmatmul.mubr.bf16.gmra.mrb[0].mxu0 %v465
        %v949 = vpop.f32.mrb[0].mxu0
        %v950 = vadd.f32 0.0, %v949
        %v951 = vpop.f32.mrb[0].mxu0
        %v952 = vadd.f32 0.0, %v951
        %v953 = vpop.f32.mrb[0].mxu0
        %v954 = vadd.f32 0.0, %v953
        %v955 = vpop.f32.mrb[0].mxu0
        %v956 = vadd.f32 0.0, %v955
        %957 = vdwg.mxu0
        %958 = vmatprep.subr.bf16.mxu0 0
        %959 = vmatpush1.bf16.xpose.msra.mxu0 %v756
        %960 = vmatprep.subr.bf16.mxu0 0
        %961 = vmatpush1.bf16.xpose.msra.mxu0 %v757
        %962 = vmatprep.subr.bf16.mxu0 0
        %963 = vmatpush1.bf16.xpose.msra.mxu0 %v758
        %964 = vmatprep.subr.bf16.mxu0 0
        %965 = vmatpush1.bf16.xpose.msra.mxu0 %v759
        %966 = vmatprep.subr.bf16.mxu0 0
        %967 = vmatpush1.bf16.xpose.msra.mxu0 %v760
        %968 = vmatprep.subr.bf16.mxu0 0
        %969 = vmatpush1.bf16.xpose.msra.mxu0 %v761
        %970 = vmatprep.subr.bf16.mxu0 0
        %971 = vmatpush1.bf16.xpose.msra.mxu0 %v762
        %972 = vmatprep.subr.bf16.mxu0 0
        %973 = vmatpush1.bf16.xpose.msra.mxu0 %v763
        %974 = vmatprep.subr.bf16.mxu0 0
        %975 = vmatpush1.bf16.xpose.msra.mxu0 %v764
        %976 = vmatprep.subr.bf16.mxu0 0
        %977 = vmatpush1.bf16.xpose.msra.mxu0 %v765
        %978 = vmatprep.subr.bf16.mxu0 0
        %979 = vmatpush1.bf16.xpose.msra.mxu0 %v766
        %980 = vmatprep.subr.bf16.mxu0 0
        %981 = vmatpush1.bf16.xpose.msra.mxu0 %v767
        %982 = vmatprep.subr.bf16.mxu0 0
        %983 = vmatpush1.bf16.xpose.msra.mxu0 %v768
        %984 = vmatprep.subr.bf16.mxu0 0
        %985 = vmatpush1.bf16.xpose.msra.mxu0 %v769
        %986 = vmatprep.subr.bf16.mxu0 0
        %987 = vmatpush1.bf16.xpose.msra.mxu0 %v770
        %988 = vmatprep.subr.bf16.mxu0 0
        %989 = vmatpush1.bf16.xpose.msra.mxu0 %v771
        %990 = vmatprep.mubr.bf16.mxu0 0
        %991 = vmatmul.mubr.bf16.gmra.mrb[0].mxu0 %v464
        %v992 = vpop.f32.mrb[0].mxu0
        %v993 = vadd.f32 0.0, %v992
        %v994 = vpop.f32.mrb[0].mxu0
        %v995 = vadd.f32 0.0, %v994
        %v996 = vpop.f32.mrb[0].mxu0
        %v997 = vadd.f32 0.0, %v996
        %v998 = vpop.f32.mrb[0].mxu0
        %v999 = vadd.f32 0.0, %v998
        %1000 = vmatprep.mubr.bf16.mxu0 0
        %1001 = vmatmul.mubr.bf16.gmra.mrb[0].mxu0 %v465
        %v1002 = vpop.f32.mrb[0].mxu0
        %v1003 = vadd.f32 0.0, %v1002
        %v1004 = vpop.f32.mrb[0].mxu0
        %v1005 = vadd.f32 0.0, %v1004
        %v1006 = vpop.f32.mrb[0].mxu0
        %v1007 = vadd.f32 0.0, %v1006
        %v1008 = vpop.f32.mrb[0].mxu0
        %v1009 = vadd.f32 0.0, %v1008
        %1010 = vdwg.mxu0
        %1011 = vmatprep.subr.bf16.mxu0 0
        %1012 = vmatpush1.bf16.xpose.msra.mxu0 %v772
        %1013 = vmatprep.subr.bf16.mxu0 0
        %1014 = vmatpush1.bf16.xpose.msra.mxu0 %v773
        %1015 = vmatprep.subr.bf16.mxu0 0
        %1016 = vmatpush1.bf16.xpose.msra.mxu0 %v774
        %1017 = vmatprep.subr.bf16.mxu0 0
        %1018 = vmatpush1.bf16.xpose.msra.mxu0 %v775
        %1019 = vmatprep.subr.bf16.mxu0 0
        %1020 = vmatpush1.bf16.xpose.msra.mxu0 %v776
        %1021 = vmatprep.subr.bf16.mxu0 0
        %1022 = vmatpush1.bf16.xpose.msra.mxu0 %v777
        %1023 = vmatprep.subr.bf16.mxu0 0
        %1024 = vmatpush1.bf16.xpose.msra.mxu0 %v778
        %1025 = vmatprep.subr.bf16.mxu0 0
        %1026 = vmatpush1.bf16.xpose.msra.mxu0 %v779
        %1027 = vmatprep.subr.bf16.mxu0 0
        %1028 = vmatpush1.bf16.xpose.msra.mxu0 %v780
        %1029 = vmatprep.subr.bf16.mxu0 0
        %1030 = vmatpush1.bf16.xpose.msra.mxu0 %v781
        %1031 = vmatprep.subr.bf16.mxu0 0
        %1032 = vmatpush1.bf16.xpose.msra.mxu0 %v782
        %1033 = vmatprep.subr.bf16.mxu0 0
        %1034 = vmatpush1.bf16.xpose.msra.mxu0 %v783
        %1035 = vmatprep.subr.bf16.mxu0 0
        %1036 = vmatpush1.bf16.xpose.msra.mxu0 %v784
        %1037 = vmatprep.subr.bf16.mxu0 0
        %1038 = vmatpush1.bf16.xpose.msra.mxu0 %v785
        %1039 = vmatprep.subr.bf16.mxu0 0
        %1040 = vmatpush1.bf16.xpose.msra.mxu0 %v786
        %1041 = vmatprep.subr.bf16.mxu0 0
        %1042 = vmatpush1.bf16.xpose.msra.mxu0 %v787
        %1043 = vmatprep.mubr.bf16.mxu0 0
        %1044 = vmatmul.mubr.bf16.gmra.mrb[0].mxu0 %v464
        %v1045 = vpop.f32.mrb[0].mxu0
        %v1046 = vadd.f32 0.0, %v1045
        %v1047 = vpop.f32.mrb[0].mxu0
        %v1048 = vadd.f32 0.0, %v1047
        %v1049 = vpop.f32.mrb[0].mxu0
        %v1050 = vadd.f32 0.0, %v1049
        %v1051 = vpop.f32.mrb[0].mxu0
        %v1052 = vadd.f32 0.0, %v1051
        %1053 = vmatprep.mubr.bf16.mxu0 0
        %1054 = vmatmul.mubr.bf16.gmra.mrb[0].mxu0 %v465
        %v1055 = vpop.f32.mrb[0].mxu0
        %v1056 = vadd.f32 0.0, %v1055
        %v1057 = vpop.f32.mrb[0].mxu0
        %v1058 = vadd.f32 0.0, %v1057
        %v1059 = vpop.f32.mrb[0].mxu0
        %v1060 = vadd.f32 0.0, %v1059
        %v1061 = vpop.f32.mrb[0].mxu0
        %v1062 = vadd.f32 0.0, %v1061
        %1063 = vdwg.mxu0
        %s1064 = smul.u32 %s23, 1024
        %v1065 = vlaneseq
        %v1066 = vand.u32 %v1065, 127
        %v1067 = vadd.s32 %v1066, 128
        %v1068 = vadd.s32 %v1066, 256
        %v1069 = vadd.s32 %v1066, 384
        %v1070 = vadd.s32 %v1066, 512
        %v1071 = vadd.s32 %v1066, 640
        %v1072 = vadd.s32 %v1066, 768
        %v1073 = vadd.s32 %v1066, 896
        %v1074 = vstv %s1064
        %v1075 = vadd.s32 %v1074, %v1066
        %v1076 = vadd.s32 %v1074, %v1067
        %v1077 = vadd.s32 %v1074, %v1068
        %v1078 = vadd.s32 %v1074, %v1069
        %v1079 = vadd.s32 %v1074, %v1070
        %v1080 = vadd.s32 %v1074, %v1071
        %v1081 = vadd.s32 %v1074, %v1072
        %v1082 = vadd.s32 %v1074, %v1073
        %1083 = vset.pattern.permute.xlu0 0
        %1084 = vperm.xlu0 %1083, %v320
        %v1085 = vpop.permute.xlu0 %1084
        %1086 = vset.pattern.permute.xlu0 0
        %1087 = vperm.xlu0 %1086, %v321
        %v1088 = vpop.permute.xlu0 %1087
        %1089 = vset.pattern.permute.xlu0 0
        %1090 = vperm.xlu0 %1089, %v322
        %v1091 = vpop.permute.xlu0 %1090
        %1092 = vset.pattern.permute.xlu0 0
        %1093 = vperm.xlu0 %1092, %v323
        %v1094 = vpop.permute.xlu0 %1093
        %vm1095 = vcmp.eq.s32.totalorder %v1075, %v1085
        %vm1096 = vcmp.eq.s32.totalorder %v1076, %v1085
        %vm1097 = vcmp.eq.s32.totalorder %v1077, %v1085
        %vm1098 = vcmp.eq.s32.totalorder %v1078, %v1085
        %vm1099 = vcmp.eq.s32.totalorder %v1079, %v1085
        %vm1100 = vcmp.eq.s32.totalorder %v1080, %v1085
        %vm1101 = vcmp.eq.s32.totalorder %v1081, %v1085
        %vm1102 = vcmp.eq.s32.totalorder %v1082, %v1085
        %vm1103 = vcmp.eq.s32.totalorder %v1075, %v1088
        %vm1104 = vcmp.eq.s32.totalorder %v1076, %v1088
        %vm1105 = vcmp.eq.s32.totalorder %v1077, %v1088
        %vm1106 = vcmp.eq.s32.totalorder %v1078, %v1088
        %vm1107 = vcmp.eq.s32.totalorder %v1079, %v1088
        %vm1108 = vcmp.eq.s32.totalorder %v1080, %v1088
        %vm1109 = vcmp.eq.s32.totalorder %v1081, %v1088
        %vm1110 = vcmp.eq.s32.totalorder %v1082, %v1088
        %vm1111 = vcmp.eq.s32.totalorder %v1075, %v1091
        %vm1112 = vcmp.eq.s32.totalorder %v1076, %v1091
        %vm1113 = vcmp.eq.s32.totalorder %v1077, %v1091
        %vm1114 = vcmp.eq.s32.totalorder %v1078, %v1091
        %vm1115 = vcmp.eq.s32.totalorder %v1079, %v1091
        %vm1116 = vcmp.eq.s32.totalorder %v1080, %v1091
        %vm1117 = vcmp.eq.s32.totalorder %v1081, %v1091
        %vm1118 = vcmp.eq.s32.totalorder %v1082, %v1091
        %vm1119 = vcmp.eq.s32.totalorder %v1075, %v1094
        %vm1120 = vcmp.eq.s32.totalorder %v1076, %v1094
        %vm1121 = vcmp.eq.s32.totalorder %v1077, %v1094
        %vm1122 = vcmp.eq.s32.totalorder %v1078, %v1094
        %vm1123 = vcmp.eq.s32.totalorder %v1079, %v1094
        %vm1124 = vcmp.eq.s32.totalorder %v1080, %v1094
        %vm1125 = vcmp.eq.s32.totalorder %v1081, %v1094
        %vm1126 = vcmp.eq.s32.totalorder %v1082, %v1094
        %v1127 = vld [vmem:[#allocation4] sm:$0xff]
        %v1128 = vld [vmem:[#allocation4 + $0x8] sm:$0xff]
        %v1129 = vld [vmem:[#allocation4 + $0x10] sm:$0xff]
        %v1130 = vld [vmem:[#allocation4 + $0x18] sm:$0xff]
        %v1131 = vsel %vm1095, %v887, 0.0
        %v1132 = vsel %vm1096, %v889, 0.0
        %v1133 = vsel %vm1097, %v940, 0.0
        %v1134 = vsel %vm1098, %v942, 0.0
        %v1135 = vsel %vm1099, %v993, 0.0
        %v1136 = vsel %vm1100, %v995, 0.0
        %v1137 = vsel %vm1101, %v1046, 0.0
        %v1138 = vsel %vm1102, %v1048, 0.0
        %v1139 = vsel %vm1103, %v891, 0.0
        %v1140 = vsel %vm1104, %v893, 0.0
        %v1141 = vsel %vm1105, %v944, 0.0
        %v1142 = vsel %vm1106, %v946, 0.0
        %v1143 = vsel %vm1107, %v997, 0.0
        %v1144 = vsel %vm1108, %v999, 0.0
        %v1145 = vsel %vm1109, %v1050, 0.0
        %v1146 = vsel %vm1110, %v1052, 0.0
        %v1147 = vsel %vm1111, %v897, 0.0
        %v1148 = vsel %vm1112, %v899, 0.0
        %v1149 = vsel %vm1113, %v950, 0.0
        %v1150 = vsel %vm1114, %v952, 0.0
        %v1151 = vsel %vm1115, %v1003, 0.0
        %v1152 = vsel %vm1116, %v1005, 0.0
        %v1153 = vsel %vm1117, %v1056, 0.0
        %v1154 = vsel %vm1118, %v1058, 0.0
        %v1155 = vsel %vm1119, %v901, 0.0
        %v1156 = vsel %vm1120, %v903, 0.0
        %v1157 = vsel %vm1121, %v954, 0.0
        %v1158 = vsel %vm1122, %v956, 0.0
        %v1159 = vsel %vm1123, %v1007, 0.0
        %v1160 = vsel %vm1124, %v1009, 0.0
        %v1161 = vsel %vm1125, %v1060, 0.0
        %v1162 = vsel %vm1126, %v1062, 0.0
        %v1163 = vadd.f32 %v1131, %v1132
        %v1164 = vadd.f32 %v1163, %v1133
        %v1165 = vadd.f32 %v1164, %v1134
        %v1166 = vadd.f32 %v1165, %v1135
        %v1167 = vadd.f32 %v1166, %v1136
        %v1168 = vadd.f32 %v1167, %v1137
        %v1169 = vadd.f32 %v1168, %v1138
        %1170 = vadd.xlane.f32.xlu0 %v1169
        %v1171 = vpop.xlane.xlu0 %1170
        %v1172 = vadd.f32 %v1139, %v1140
        %v1173 = vadd.f32 %v1172, %v1141
        %v1174 = vadd.f32 %v1173, %v1142
        %v1175 = vadd.f32 %v1174, %v1143
        %v1176 = vadd.f32 %v1175, %v1144
        %v1177 = vadd.f32 %v1176, %v1145
        %v1178 = vadd.f32 %v1177, %v1146
        %1179 = vadd.xlane.f32.xlu0 %v1178
        %v1180 = vpop.xlane.xlu0 %1179
        %v1181 = vadd.f32 %v1147, %v1148
        %v1182 = vadd.f32 %v1181, %v1149
        %v1183 = vadd.f32 %v1182, %v1150
        %v1184 = vadd.f32 %v1183, %v1151
        %v1185 = vadd.f32 %v1184, %v1152
        %v1186 = vadd.f32 %v1185, %v1153
        %v1187 = vadd.f32 %v1186, %v1154
        %1188 = vadd.xlane.f32.xlu0 %v1187
        %v1189 = vpop.xlane.xlu0 %1188
        %v1190 = vadd.f32 %v1155, %v1156
        %v1191 = vadd.f32 %v1190, %v1157
        %v1192 = vadd.f32 %v1191, %v1158
        %v1193 = vadd.f32 %v1192, %v1159
        %v1194 = vadd.f32 %v1193, %v1160
        %v1195 = vadd.f32 %v1194, %v1161
        %v1196 = vadd.f32 %v1195, %v1162
        %1197 = vadd.xlane.f32.xlu0 %v1196
        %v1198 = vpop.xlane.xlu0 %1197
        %v1199 = vadd.f32 %v1127, %v1171
        %v1200 = vadd.f32 %v1128, %v1180
        %v1201 = vadd.f32 %v1129, %v1189
        %v1202 = vadd.f32 %v1130, %v1198
        %vm1203 = vcmask 7168
        %1204 = vst.msk [vmem:[#allocation4] sm:$0xff] %vm1203, %v1199
        %1205 = vst.msk [vmem:[#allocation4 + $0x8] sm:$0xff] %vm1203, %v1200
        %1206 = vst.msk [vmem:[#allocation4 + $0x10] sm:$0xff] %vm1203, %v1201
        %1207 = vst.msk [vmem:[#allocation4 + $0x18] sm:$0xff] %vm1203, %v1202
        %v1208 = vmax.f32 %v887, %v889
        %v1209 = vmax.f32 %v1208, %v940
        %v1210 = vmax.f32 %v1209, %v942
        %v1211 = vmax.f32 %v1210, %v993
        %v1212 = vmax.f32 %v1211, %v995
        %v1213 = vmax.f32 %v1212, %v1046
        %v1214 = vmax.f32 %v1213, %v1048
        %1215 = vmax.xlane.f32.xlu0 %v1214
        %v1216 = vpop.xlane.xlu0 %1215
        %v1217 = vmax.f32 %v891, %v893
        %v1218 = vmax.f32 %v1217, %v944
        %v1219 = vmax.f32 %v1218, %v946
        %v1220 = vmax.f32 %v1219, %v997
        %v1221 = vmax.f32 %v1220, %v999
        %v1222 = vmax.f32 %v1221, %v1050
        %v1223 = vmax.f32 %v1222, %v1052
        %1224 = vmax.xlane.f32.xlu0 %v1223
        %v1225 = vpop.xlane.xlu0 %1224
        %v1226 = vmax.f32 %v897, %v899
        %v1227 = vmax.f32 %v1226, %v950
        %v1228 = vmax.f32 %v1227, %v952
        %v1229 = vmax.f32 %v1228, %v1003
        %v1230 = vmax.f32 %v1229, %v1005
        %v1231 = vmax.f32 %v1230, %v1056
        %v1232 = vmax.f32 %v1231, %v1058
        %1233 = vmax.xlane.f32.xlu0 %v1232
        %v1234 = vpop.xlane.xlu0 %1233
        %v1235 = vmax.f32 %v901, %v903
        %v1236 = vmax.f32 %v1235, %v954
        %v1237 = vmax.f32 %v1236, %v956
        %v1238 = vmax.f32 %v1237, %v1007
        %v1239 = vmax.f32 %v1238, %v1009
        %v1240 = vmax.f32 %v1239, %v1060
        %v1241 = vmax.f32 %v1240, %v1062
        %1242 = vmax.xlane.f32.xlu0 %v1241
        %v1243 = vpop.xlane.xlu0 %1242
        %vm1244 = vcmp.eq.f32.partialorder %v887, %v1216
        %vm1245 = vcmp.eq.f32.partialorder %v889, %v1216
        %vm1246 = vcmp.eq.f32.partialorder %v940, %v1216
        %vm1247 = vcmp.eq.f32.partialorder %v942, %v1216
        %vm1248 = vcmp.eq.f32.partialorder %v993, %v1216
        %vm1249 = vcmp.eq.f32.partialorder %v995, %v1216
        %vm1250 = vcmp.eq.f32.partialorder %v1046, %v1216
        %vm1251 = vcmp.eq.f32.partialorder %v1048, %v1216
        %vm1252 = vcmp.eq.f32.partialorder %v891, %v1225
        %vm1253 = vcmp.eq.f32.partialorder %v893, %v1225
        %vm1254 = vcmp.eq.f32.partialorder %v944, %v1225
        %vm1255 = vcmp.eq.f32.partialorder %v946, %v1225
        %vm1256 = vcmp.eq.f32.partialorder %v997, %v1225
        %vm1257 = vcmp.eq.f32.partialorder %v999, %v1225
        %vm1258 = vcmp.eq.f32.partialorder %v1050, %v1225
        %vm1259 = vcmp.eq.f32.partialorder %v1052, %v1225
        %vm1260 = vcmp.eq.f32.partialorder %v897, %v1234
        %vm1261 = vcmp.eq.f32.partialorder %v899, %v1234
        %vm1262 = vcmp.eq.f32.partialorder %v950, %v1234
        %vm1263 = vcmp.eq.f32.partialorder %v952, %v1234
        %vm1264 = vcmp.eq.f32.partialorder %v1003, %v1234
        %vm1265 = vcmp.eq.f32.partialorder %v1005, %v1234
        %vm1266 = vcmp.eq.f32.partialorder %v1056, %v1234
        %vm1267 = vcmp.eq.f32.partialorder %v1058, %v1234
        %vm1268 = vcmp.eq.f32.partialorder %v901, %v1243
        %vm1269 = vcmp.eq.f32.partialorder %v903, %v1243
        %vm1270 = vcmp.eq.f32.partialorder %v954, %v1243
        %vm1271 = vcmp.eq.f32.partialorder %v956, %v1243
        %vm1272 = vcmp.eq.f32.partialorder %v1007, %v1243
        %vm1273 = vcmp.eq.f32.partialorder %v1009, %v1243
        %vm1274 = vcmp.eq.f32.partialorder %v1060, %v1243
        %vm1275 = vcmp.eq.f32.partialorder %v1062, %v1243
        %v1276 = vsel %vm1244, %v1075, 1073741824
        %v1277 = vsel %vm1245, %v1076, 1073741824
        %v1278 = vsel %vm1246, %v1077, 1073741824
        %v1279 = vsel %vm1247, %v1078, 1073741824
        %v1280 = vsel %vm1248, %v1079, 1073741824
        %v1281 = vsel %vm1249, %v1080, 1073741824
        %v1282 = vsel %vm1250, %v1081, 1073741824
        %v1283 = vsel %vm1251, %v1082, 1073741824
        %v1284 = vsel %vm1252, %v1075, 1073741824
        %v1285 = vsel %vm1253, %v1076, 1073741824
        %v1286 = vsel %vm1254, %v1077, 1073741824
        %v1287 = vsel %vm1255, %v1078, 1073741824
        %v1288 = vsel %vm1256, %v1079, 1073741824
        %v1289 = vsel %vm1257, %v1080, 1073741824
        %v1290 = vsel %vm1258, %v1081, 1073741824
        %v1291 = vsel %vm1259, %v1082, 1073741824
        %v1292 = vsel %vm1260, %v1075, 1073741824
        %v1293 = vsel %vm1261, %v1076, 1073741824
        %v1294 = vsel %vm1262, %v1077, 1073741824
        %v1295 = vsel %vm1263, %v1078, 1073741824
        %v1296 = vsel %vm1264, %v1079, 1073741824
        %v1297 = vsel %vm1265, %v1080, 1073741824
        %v1298 = vsel %vm1266, %v1081, 1073741824
        %v1299 = vsel %vm1267, %v1082, 1073741824
        %v1300 = vsel %vm1268, %v1075, 1073741824
        %v1301 = vsel %vm1269, %v1076, 1073741824
        %v1302 = vsel %vm1270, %v1077, 1073741824
        %v1303 = vsel %vm1271, %v1078, 1073741824
        %v1304 = vsel %vm1272, %v1079, 1073741824
        %v1305 = vsel %vm1273, %v1080, 1073741824
        %v1306 = vsel %vm1274, %v1081, 1073741824
        %v1307 = vsel %vm1275, %v1082, 1073741824
        %vm1308 = vcmp.lt.s32.totalorder %v1276, %v1277
        %v1309 = vsel %vm1308, %v1276, %v1277
        %vm1310 = vcmp.lt.s32.totalorder %v1309, %v1278
        %v1311 = vsel %vm1310, %v1309, %v1278
        %vm1312 = vcmp.lt.s32.totalorder %v1311, %v1279
        %v1313 = vsel %vm1312, %v1311, %v1279
        %vm1314 = vcmp.lt.s32.totalorder %v1313, %v1280
        %v1315 = vsel %vm1314, %v1313, %v1280
        %vm1316 = vcmp.lt.s32.totalorder %v1315, %v1281
        %v1317 = vsel %vm1316, %v1315, %v1281
        %vm1318 = vcmp.lt.s32.totalorder %v1317, %v1282
        %v1319 = vsel %vm1318, %v1317, %v1282
        %vm1320 = vcmp.lt.s32.totalorder %v1319, %v1283
        %v1321 = vsel %vm1320, %v1319, %v1283
        %v1322 = vand.u32 %v1321, 65535
        %v1323 = vshra.s32 %v1321, 16
        %v1324 = vcvt.s32.f32 %v1322
        %v1325 = vcvt.s32.f32 %v1323
        %1326 = vmin.xlane.f32.xlu0 %v1325
        %v1327 = vpop.xlane.xlu0 %1326
        %vm1328 = vcmp.eq.f32.partialorder %v1325, %v1327
        %v1329 = vsel %vm1328, %v1324, inf
        %1330 = vmin.xlane.f32.xlu0 %v1329
        %v1331 = vpop.xlane.xlu0 %1330
        %v1332 = vcvt.f32.s32 %v1331
        %v1333 = vcvt.f32.s32 %v1327
        %v1334 = vshll.u32 %v1333, 16
        %v1335 = vadd.s32 %v1334, %v1332
        %vm1336 = vcmp.lt.s32.totalorder %v1284, %v1285
        %v1337 = vsel %vm1336, %v1284, %v1285
        %vm1338 = vcmp.lt.s32.totalorder %v1337, %v1286
        %v1339 = vsel %vm1338, %v1337, %v1286
        %vm1340 = vcmp.lt.s32.totalorder %v1339, %v1287
        %v1341 = vsel %vm1340, %v1339, %v1287
        %vm1342 = vcmp.lt.s32.totalorder %v1341, %v1288
        %v1343 = vsel %vm1342, %v1341, %v1288
        %vm1344 = vcmp.lt.s32.totalorder %v1343, %v1289
        %v1345 = vsel %vm1344, %v1343, %v1289
        %vm1346 = vcmp.lt.s32.totalorder %v1345, %v1290
        %v1347 = vsel %vm1346, %v1345, %v1290
        %vm1348 = vcmp.lt.s32.totalorder %v1347, %v1291
        %v1349 = vsel %vm1348, %v1347, %v1291
        %v1350 = vand.u32 %v1349, 65535
        %v1351 = vshra.s32 %v1349, 16
        %v1352 = vcvt.s32.f32 %v1350
        %v1353 = vcvt.s32.f32 %v1351
        %1354 = vmin.xlane.f32.xlu0 %v1353
        %v1355 = vpop.xlane.xlu0 %1354
        %vm1356 = vcmp.eq.f32.partialorder %v1353, %v1355
        %v1357 = vsel %vm1356, %v1352, inf
        %1358 = vmin.xlane.f32.xlu0 %v1357
        %v1359 = vpop.xlane.xlu0 %1358
        %v1360 = vcvt.f32.s32 %v1359
        %v1361 = vcvt.f32.s32 %v1355
        %v1362 = vshll.u32 %v1361, 16
        %v1363 = vadd.s32 %v1362, %v1360
        %vm1364 = vcmp.lt.s32.totalorder %v1292, %v1293
        %v1365 = vsel %vm1364, %v1292, %v1293
        %vm1366 = vcmp.lt.s32.totalorder %v1365, %v1294
        %v1367 = vsel %vm1366, %v1365, %v1294
        %vm1368 = vcmp.lt.s32.totalorder %v1367, %v1295
        %v1369 = vsel %vm1368, %v1367, %v1295
        %vm1370 = vcmp.lt.s32.totalorder %v1369, %v1296
        %v1371 = vsel %vm1370, %v1369, %v1296
        %vm1372 = vcmp.lt.s32.totalorder %v1371, %v1297
        %v1373 = vsel %vm1372, %v1371, %v1297
        %vm1374 = vcmp.lt.s32.totalorder %v1373, %v1298
        %v1375 = vsel %vm1374, %v1373, %v1298
        %vm1376 = vcmp.lt.s32.totalorder %v1375, %v1299
        %v1377 = vsel %vm1376, %v1375, %v1299
        %v1378 = vand.u32 %v1377, 65535
        %v1379 = vshra.s32 %v1377, 16
        %v1380 = vcvt.s32.f32 %v1378
        %v1381 = vcvt.s32.f32 %v1379
        %1382 = vmin.xlane.f32.xlu0 %v1381
        %v1383 = vpop.xlane.xlu0 %1382
        %vm1384 = vcmp.eq.f32.partialorder %v1381, %v1383
        %v1385 = vsel %vm1384, %v1380, inf
        %1386 = vmin.xlane.f32.xlu0 %v1385
        %v1387 = vpop.xlane.xlu0 %1386
        %v1388 = vcvt.f32.s32 %v1387
        %v1389 = vcvt.f32.s32 %v1383
        %v1390 = vshll.u32 %v1389, 16
        %v1391 = vadd.s32 %v1390, %v1388
        %vm1392 = vcmp.lt.s32.totalorder %v1300, %v1301
        %v1393 = vsel %vm1392, %v1300, %v1301
        %vm1394 = vcmp.lt.s32.totalorder %v1393, %v1302
        %v1395 = vsel %vm1394, %v1393, %v1302
        %vm1396 = vcmp.lt.s32.totalorder %v1395, %v1303
        %v1397 = vsel %vm1396, %v1395, %v1303
        %vm1398 = vcmp.lt.s32.totalorder %v1397, %v1304
        %v1399 = vsel %vm1398, %v1397, %v1304
        %vm1400 = vcmp.lt.s32.totalorder %v1399, %v1305
        %v1401 = vsel %vm1400, %v1399, %v1305
        %vm1402 = vcmp.lt.s32.totalorder %v1401, %v1306
        %v1403 = vsel %vm1402, %v1401, %v1306
        %vm1404 = vcmp.lt.s32.totalorder %v1403, %v1307
        %v1405 = vsel %vm1404, %v1403, %v1307
        %v1406 = vand.u32 %v1405, 65535
        %v1407 = vshra.s32 %v1405, 16
        %v1408 = vcvt.s32.f32 %v1406
        %v1409 = vcvt.s32.f32 %v1407
        %1410 = vmin.xlane.f32.xlu0 %v1409
        %v1411 = vpop.xlane.xlu0 %1410
        %vm1412 = vcmp.eq.f32.partialorder %v1409, %v1411
        %v1413 = vsel %vm1412, %v1408, inf
        %1414 = vmin.xlane.f32.xlu0 %v1413
        %v1415 = vpop.xlane.xlu0 %1414
        %v1416 = vcvt.f32.s32 %v1415
        %v1417 = vcvt.f32.s32 %v1411
        %v1418 = vshll.u32 %v1417, 16
        %v1419 = vadd.s32 %v1418, %v1416
        %v1420 = vld [vmem:[#allocation2] sm:$0xff]
        %v1421 = vld [vmem:[#allocation2 + $0x8] sm:$0xff]
        %v1422 = vld [vmem:[#allocation2 + $0x10] sm:$0xff]
        %v1423 = vld [vmem:[#allocation2 + $0x18] sm:$0xff]
        %vm1424 = vcmp.gt.f32.partialorder %v1216, %v1420
        %vm1425 = vcmp.gt.f32.partialorder %v1225, %v1421
        %vm1426 = vcmp.gt.f32.partialorder %v1234, %v1422
        %vm1427 = vcmp.gt.f32.partialorder %v1243, %v1423
        %v1428 = vld [vmem:[#allocation5] sm:$0xff]
        %v1429 = vld [vmem:[#allocation5 + $0x8] sm:$0xff]
        %v1430 = vld [vmem:[#allocation5 + $0x10] sm:$0xff]
        %v1431 = vld [vmem:[#allocation5 + $0x18] sm:$0xff]
        %v1432 = vsel %vm1424, %v1335, %v1428
        %v1433 = vsel %vm1425, %v1363, %v1429
        %v1434 = vsel %vm1426, %v1391, %v1430
        %v1435 = vsel %vm1427, %v1419, %v1431
        %1436 = vst.msk [vmem:[#allocation5] sm:$0xff] %vm1203, %v1432
        %1437 = vst.msk [vmem:[#allocation5 + $0x8] sm:$0xff] %vm1203, %v1433
        %1438 = vst.msk [vmem:[#allocation5 + $0x10] sm:$0xff] %vm1203, %v1434
        %1439 = vst.msk [vmem:[#allocation5 + $0x18] sm:$0xff] %vm1203, %v1435
        %v1440 = vmax.f32 %v1420, %v1216
        %v1441 = vmax.f32 %v1421, %v1225
        %v1442 = vmax.f32 %v1422, %v1234
        %v1443 = vmax.f32 %v1423, %v1243
        %v1444 = vld [vmem:[#allocation3] sm:$0xff]
        %v1445 = vld [vmem:[#allocation3 + $0x8] sm:$0xff]
        %v1446 = vld [vmem:[#allocation3 + $0x10] sm:$0xff]
        %v1447 = vld [vmem:[#allocation3 + $0x18] sm:$0xff]
        %v1448 = vsub.f32 %v1420, %v1440
        %v1449 = vsub.f32 %v1421, %v1441
        %v1450 = vsub.f32 %v1422, %v1442
        %v1451 = vsub.f32 %v1423, %v1443
        %v1452 = vmul.f32 %v1448, 1.442695
        %v1453 = vpow.pop %v1452
        %v1454 = vmul.f32 %v1449, 1.442695
        %v1455 = vpow.pop %v1454
        %v1456 = vmul.f32 %v1450, 1.442695
        %v1457 = vpow.pop %v1456
        %v1458 = vmul.f32 %v1451, 1.442695
        %v1459 = vpow.pop %v1458
        %v1460 = vmul.f32 %v1444, %v1453
        %v1461 = vmul.f32 %v1445, %v1455
        %v1462 = vmul.f32 %v1446, %v1457
        %v1463 = vmul.f32 %v1447, %v1459
        %1465 = vset.pattern.permute.xlu0 0
        %1466 = vperm.xlu0 %1465, %v1440
        %v1467 = vpop.permute.xlu0 %1466
        %1470 = vset.pattern.permute.xlu0 0
        %1471 = vperm.xlu0 %1470, %v1441
        %v1472 = vpop.permute.xlu0 %1471
        %1475 = vset.pattern.permute.xlu0 0
        %1476 = vperm.xlu0 %1475, %v1442
        %v1477 = vpop.permute.xlu0 %1476
        %1480 = vset.pattern.permute.xlu0 0
        %1481 = vperm.xlu0 %1480, %v1443
        %v1482 = vpop.permute.xlu0 %1481
        %v1484 = vsub.f32 %v887, %v1467
        %v1485 = vsub.f32 %v889, %v1467
        %v1486 = vsub.f32 %v940, %v1467
        %v1487 = vsub.f32 %v942, %v1467
        %v1488 = vsub.f32 %v993, %v1467
        %v1489 = vsub.f32 %v995, %v1467
        %v1490 = vsub.f32 %v1046, %v1467
        %v1491 = vsub.f32 %v1048, %v1467
        %v1492 = vsub.f32 %v891, %v1472
        %v1493 = vsub.f32 %v893, %v1472
        %v1494 = vsub.f32 %v944, %v1472
        %v1495 = vsub.f32 %v946, %v1472
        %v1496 = vsub.f32 %v997, %v1472
        %v1497 = vsub.f32 %v999, %v1472
        %v1498 = vsub.f32 %v1050, %v1472
        %v1499 = vsub.f32 %v1052, %v1472
        %v1500 = vsub.f32 %v897, %v1477
        %v1501 = vsub.f32 %v899, %v1477
        %v1502 = vsub.f32 %v950, %v1477
        %v1503 = vsub.f32 %v952, %v1477
        %v1504 = vsub.f32 %v1003, %v1477
        %v1505 = vsub.f32 %v1005, %v1477
        %v1506 = vsub.f32 %v1056, %v1477
        %v1507 = vsub.f32 %v1058, %v1477
        %v1508 = vsub.f32 %v901, %v1482
        %v1509 = vsub.f32 %v903, %v1482
        %v1510 = vsub.f32 %v954, %v1482
        %v1511 = vsub.f32 %v956, %v1482
        %v1512 = vsub.f32 %v1007, %v1482
        %v1513 = vsub.f32 %v1009, %v1482
        %v1514 = vsub.f32 %v1060, %v1482
        %v1515 = vsub.f32 %v1062, %v1482
        %v1516 = vmul.f32 %v1484, 1.442695
        %v1517 = vpow.pop %v1516
        %v1518 = vmul.f32 %v1485, 1.442695
        %v1519 = vpow.pop %v1518
        %v1520 = vmul.f32 %v1486, 1.442695
        %v1521 = vpow.pop %v1520
        %v1522 = vmul.f32 %v1487, 1.442695
        %v1523 = vpow.pop %v1522
        %v1524 = vmul.f32 %v1488, 1.442695
        %v1525 = vpow.pop %v1524
        %v1526 = vmul.f32 %v1489, 1.442695
        %v1527 = vpow.pop %v1526
        %v1528 = vmul.f32 %v1490, 1.442695
        %v1529 = vpow.pop %v1528
        %v1530 = vmul.f32 %v1491, 1.442695
        %v1531 = vpow.pop %v1530
        %v1532 = vmul.f32 %v1492, 1.442695
        %v1533 = vpow.pop %v1532
        %v1534 = vmul.f32 %v1493, 1.442695
        %v1535 = vpow.pop %v1534
        %v1536 = vmul.f32 %v1494, 1.442695
        %v1537 = vpow.pop %v1536
        %v1538 = vmul.f32 %v1495, 1.442695
        %v1539 = vpow.pop %v1538
        %v1540 = vmul.f32 %v1496, 1.442695
        %v1541 = vpow.pop %v1540
        %v1542 = vmul.f32 %v1497, 1.442695
        %v1543 = vpow.pop %v1542
        %v1544 = vmul.f32 %v1498, 1.442695
        %v1545 = vpow.pop %v1544
        %v1546 = vmul.f32 %v1499, 1.442695
        %v1547 = vpow.pop %v1546
        %v1548 = vmul.f32 %v1500, 1.442695
        %v1549 = vpow.pop %v1548
        %v1550 = vmul.f32 %v1501, 1.442695
        %v1551 = vpow.pop %v1550
        %v1552 = vmul.f32 %v1502, 1.442695
        %v1553 = vpow.pop %v1552
        %v1554 = vmul.f32 %v1503, 1.442695
        %v1555 = vpow.pop %v1554
        %v1556 = vmul.f32 %v1504, 1.442695
        %v1557 = vpow.pop %v1556
        %v1558 = vmul.f32 %v1505, 1.442695
        %v1559 = vpow.pop %v1558
        %v1560 = vmul.f32 %v1506, 1.442695
        %v1561 = vpow.pop %v1560
        %v1562 = vmul.f32 %v1507, 1.442695
        %v1563 = vpow.pop %v1562
        %v1564 = vmul.f32 %v1508, 1.442695
        %v1565 = vpow.pop %v1564
        %v1566 = vmul.f32 %v1509, 1.442695
        %v1567 = vpow.pop %v1566
        %v1568 = vmul.f32 %v1510, 1.442695
        %v1569 = vpow.pop %v1568
        %v1570 = vmul.f32 %v1511, 1.442695
        %v1571 = vpow.pop %v1570
        %v1572 = vmul.f32 %v1512, 1.442695
        %v1573 = vpow.pop %v1572
        %v1574 = vmul.f32 %v1513, 1.442695
        %v1575 = vpow.pop %v1574
        %v1576 = vmul.f32 %v1514, 1.442695
        %v1577 = vpow.pop %v1576
        %v1578 = vmul.f32 %v1515, 1.442695
        %v1579 = vpow.pop %v1578
        %v1580 = vadd.f32 %v1517, %v1519
        %v1581 = vadd.f32 %v1580, %v1521
        %v1582 = vadd.f32 %v1581, %v1523
        %v1583 = vadd.f32 %v1582, %v1525
        %v1584 = vadd.f32 %v1583, %v1527
        %v1585 = vadd.f32 %v1584, %v1529
        %v1586 = vadd.f32 %v1585, %v1531
        %1587 = vadd.xlane.f32.xlu0 %v1586
        %v1588 = vpop.xlane.xlu0 %1587
        %v1589 = vadd.f32 %v1533, %v1535
        %v1590 = vadd.f32 %v1589, %v1537
        %v1591 = vadd.f32 %v1590, %v1539
        %v1592 = vadd.f32 %v1591, %v1541
        %v1593 = vadd.f32 %v1592, %v1543
        %v1594 = vadd.f32 %v1593, %v1545
        %v1595 = vadd.f32 %v1594, %v1547
        %1596 = vadd.xlane.f32.xlu0 %v1595
        %v1597 = vpop.xlane.xlu0 %1596
        %v1598 = vadd.f32 %v1549, %v1551
        %v1599 = vadd.f32 %v1598, %v1553
        %v1600 = vadd.f32 %v1599, %v1555
        %v1601 = vadd.f32 %v1600, %v1557
        %v1602 = vadd.f32 %v1601, %v1559
        %v1603 = vadd.f32 %v1602, %v1561
        %v1604 = vadd.f32 %v1603, %v1563
        %1605 = vadd.xlane.f32.xlu0 %v1604
        %v1606 = vpop.xlane.xlu0 %1605
        %v1607 = vadd.f32 %v1565, %v1567
        %v1608 = vadd.f32 %v1607, %v1569
        %v1609 = vadd.f32 %v1608, %v1571
        %v1610 = vadd.f32 %v1609, %v1573
        %v1611 = vadd.f32 %v1610, %v1575
        %v1612 = vadd.f32 %v1611, %v1577
        %v1613 = vadd.f32 %v1612, %v1579
        %1614 = vadd.xlane.f32.xlu0 %v1613
        %v1615 = vpop.xlane.xlu0 %1614
        %v1616 = vadd.f32 %v1460, %v1588
        %v1617 = vadd.f32 %v1461, %v1597
        %v1618 = vadd.f32 %v1462, %v1606
        %v1619 = vadd.f32 %v1463, %v1615
        %1620 = vst.msk [vmem:[#allocation3] sm:$0xff] %vm1203, %v1616
        %1621 = vst.msk [vmem:[#allocation3 + $0x8] sm:$0xff] %vm1203, %v1617
        %1622 = vst.msk [vmem:[#allocation3 + $0x10] sm:$0xff] %vm1203, %v1618
        %1623 = vst.msk [vmem:[#allocation3 + $0x18] sm:$0xff] %vm1203, %v1619
        %1624 = vst.msk [vmem:[#allocation2] sm:$0xff] %vm1203, %v1440
        %1625 = vst.msk [vmem:[#allocation2 + $0x8] sm:$0xff] %vm1203, %v1441
        %1626 = vst.msk [vmem:[#allocation2 + $0x10] sm:$0xff] %vm1203, %v1442
        %1627 = vst.msk [vmem:[#allocation2 + $0x18] sm:$0xff] %vm1203, %v1443
        %p1628 = scmp.eq.s32.totalorder %s23, 1
        // Predicated region
        $region45: #{multi_llama_forward.3} parent=35 // pred_check
          %p1629 = pneg %p1628
        $region46: #{multi_llama_forward.3} parent=35 // pred_check_branch
          %1631 = sbr.rel (%p1629) target = $region48
        $region47: #{multi_llama_forward.3} parent=35 // pred_region
          %v1632 = vld [vmem:[#allocation2] sm:$0xff]
          %v1633 = vld [vmem:[#allocation2 + $0x8] sm:$0xff]
          %v1634 = vld [vmem:[#allocation2 + $0x10] sm:$0xff]
          %v1635 = vld [vmem:[#allocation2 + $0x18] sm:$0xff]
          %v1636 = vld [vmem:[#allocation3] sm:$0xff]
          %v1637 = vld [vmem:[#allocation3 + $0x8] sm:$0xff]
          %v1638 = vld [vmem:[#allocation3 + $0x10] sm:$0xff]
          %v1639 = vld [vmem:[#allocation3 + $0x18] sm:$0xff]
          %v1640 = vlog2.pop %v1636
          %v1641 = vmul.f32 %v1640, 0.6931472
          %v1642 = vlog2.pop %v1637
          %v1643 = vmul.f32 %v1642, 0.6931472
          %v1644 = vlog2.pop %v1638
          %v1645 = vmul.f32 %v1644, 0.6931472
          %v1646 = vlog2.pop %v1639
          %v1647 = vmul.f32 %v1646, 0.6931472
          %v1648 = vadd.f32 %v1632, %v1641
          %v1649 = vadd.f32 %v1633, %v1643
          %v1650 = vadd.f32 %v1634, %v1645
          %v1651 = vadd.f32 %v1635, %v1647
          %vm1652 = vcmp.ne.s32.totalorder %v320, 4294967196
          %vm1653 = vcmp.ne.s32.totalorder %v321, 4294967196
          %vm1654 = vcmp.ne.s32.totalorder %v322, 4294967196
          %vm1655 = vcmp.ne.s32.totalorder %v323, 4294967196
          %v1656 = vld [vmem:[#allocation4] sm:$0xff]
          %v1657 = vld [vmem:[#allocation4 + $0x8] sm:$0xff]
          %v1658 = vld [vmem:[#allocation4 + $0x10] sm:$0xff]
          %v1659 = vld [vmem:[#allocation4 + $0x18] sm:$0xff]
          %v1660 = vsub.f32 %v1648, %v1656
          %v1661 = vsub.f32 %v1649, %v1657
          %v1662 = vsub.f32 %v1650, %v1658
          %v1663 = vsub.f32 %v1651, %v1659
          %v1664 = vsel %vm1652, %v1660, 0.0
          %v1665 = vsel %vm1653, %v1661, 0.0
          %v1666 = vsel %vm1654, %v1662, 0.0
          %v1667 = vsel %vm1655, %v1663, 0.0
          %v1668 = vld [vmem:[%s290] sm:$0xff]
          %v1669 = vld [vmem:[%s290 + $0x8] sm:$0xff]
          %v1670 = vld [vmem:[%s290 + $0x10] sm:$0xff]
          %v1671 = vld [vmem:[%s290 + $0x18] sm:$0xff]
          %v1672 = vld [vmem:[#allocation5] sm:$0xff]
          %v1673 = vld [vmem:[#allocation5 + $0x8] sm:$0xff]
          %v1674 = vld [vmem:[#allocation5 + $0x10] sm:$0xff]
          %v1675 = vld [vmem:[#allocation5 + $0x18] sm:$0xff]
          %vm1676 = vcmp.eq.s32.totalorder %v1672, %v320
          %vm1677 = vcmp.eq.s32.totalorder %v1673, %v321
          %vm1678 = vcmp.eq.s32.totalorder %v1674, %v322
          %vm1679 = vcmp.eq.s32.totalorder %v1675, %v323
          %vm1680 = vmxor %vm1652, 1
          %vm1681 = vmxor %vm1653, 1
          %vm1682 = vmxor %vm1654, 1
          %vm1683 = vmxor %vm1655, 1
          %vm1684 = vmor %vm1676, %vm1680
          %vm1685 = vmor %vm1677, %vm1681
          %vm1686 = vmor %vm1678, %vm1682
          %vm1687 = vmor %vm1679, %vm1683
          %vm1688 = vcmp.eq.s32.totalorder %v1066, 0
          %1690 = vset.pattern.permute.xlu0 0
          %1691 = vperm.xlu0 %1690, %v1664
          %v1692 = vpop.permute.xlu0 %1691
          %1695 = vset.pattern.permute.xlu0 0
          %1696 = vperm.xlu0 %1695, %v1665
          %v1697 = vpop.permute.xlu0 %1696
          %1700 = vset.pattern.permute.xlu0 0
          %1701 = vperm.xlu0 %1700, %v1666
          %v1702 = vpop.permute.xlu0 %1701
          %1705 = vset.pattern.permute.xlu0 0
          %1706 = vperm.xlu0 %1705, %v1667
          %v1707 = vpop.permute.xlu0 %1706
          %v1709 = vsel %vm1688, %v1692, 0.0
          %v1710 = vsel %vm1688, %v1697, 0.0
          %v1711 = vsel %vm1688, %v1702, 0.0
          %v1712 = vsel %vm1688, %v1707, 0.0
          %vm1713 = vcmp.eq.s32.totalorder %v1066, 1
          %v1714 = vsel %vm1652, 1, 0
          %v1715 = vsel %vm1653, 1, 0
          %v1716 = vsel %vm1654, 1, 0
          %v1717 = vsel %vm1655, 1, 0
          %v1718 = vcvt.s32.f32 %v1714
          %v1719 = vcvt.s32.f32 %v1715
          %v1720 = vcvt.s32.f32 %v1716
          %v1721 = vcvt.s32.f32 %v1717
          %1723 = vset.pattern.permute.xlu0 0
          %1724 = vperm.xlu0 %1723, %v1718
          %v1725 = vpop.permute.xlu0 %1724
          %1728 = vset.pattern.permute.xlu0 0
          %1729 = vperm.xlu0 %1728, %v1719
          %v1730 = vpop.permute.xlu0 %1729
          %1733 = vset.pattern.permute.xlu0 0
          %1734 = vperm.xlu0 %1733, %v1720
          %v1735 = vpop.permute.xlu0 %1734
          %1738 = vset.pattern.permute.xlu0 0
          %1739 = vperm.xlu0 %1738, %v1721
          %v1740 = vpop.permute.xlu0 %1739
          %v1742 = vsel %vm1713, %v1725, %v1709
          %v1743 = vsel %vm1713, %v1730, %v1710
          %v1744 = vsel %vm1713, %v1735, %v1711
          %v1745 = vsel %vm1713, %v1740, %v1712
          %vm1746 = vcmp.eq.s32.totalorder %v1066, 2
          %v1747 = vsel %vm1684, 1, 0
          %v1748 = vsel %vm1685, 1, 0
          %v1749 = vsel %vm1686, 1, 0
          %v1750 = vsel %vm1687, 1, 0
          %v1751 = vcvt.s32.f32 %v1747
          %v1752 = vcvt.s32.f32 %v1748
          %v1753 = vcvt.s32.f32 %v1749
          %v1754 = vcvt.s32.f32 %v1750
          %1756 = vset.pattern.permute.xlu0 0
          %1757 = vperm.xlu0 %1756, %v1751
          %v1758 = vpop.permute.xlu0 %1757
          %1761 = vset.pattern.permute.xlu0 0
          %1762 = vperm.xlu0 %1761, %v1752
          %v1763 = vpop.permute.xlu0 %1762
          %1766 = vset.pattern.permute.xlu0 0
          %1767 = vperm.xlu0 %1766, %v1753
          %v1768 = vpop.permute.xlu0 %1767
          %1771 = vset.pattern.permute.xlu0 0
          %1772 = vperm.xlu0 %1771, %v1754
          %v1773 = vpop.permute.xlu0 %1772
          %v1775 = vsel %vm1746, %v1758, %v1742
          %v1776 = vsel %vm1746, %v1763, %v1743
          %v1777 = vsel %vm1746, %v1768, %v1744
          %v1778 = vsel %vm1746, %v1773, %v1745
          %vm1779 = vcmp.eq.s32.totalorder %v1066, 3
          %v1780 = vmul.f32 %v1668, %v1664
          %v1781 = vmul.f32 %v1669, %v1665
          %v1782 = vmul.f32 %v1670, %v1666
          %v1783 = vmul.f32 %v1671, %v1667
          %1785 = vset.pattern.permute.xlu0 0
          %1786 = vperm.xlu0 %1785, %v1780
          %v1787 = vpop.permute.xlu0 %1786
          %1790 = vset.pattern.permute.xlu0 0
          %1791 = vperm.xlu0 %1790, %v1781
          %v1792 = vpop.permute.xlu0 %1791
          %1795 = vset.pattern.permute.xlu0 0
          %1796 = vperm.xlu0 %1795, %v1782
          %v1797 = vpop.permute.xlu0 %1796
          %1800 = vset.pattern.permute.xlu0 0
          %1801 = vperm.xlu0 %1800, %v1783
          %v1802 = vpop.permute.xlu0 %1801
          %v1804 = vsel %vm1779, %v1787, %v1775
          %v1805 = vsel %vm1779, %v1792, %v1776
          %v1806 = vsel %vm1779, %v1797, %v1777
          %v1807 = vsel %vm1779, %v1802, %v1778
          %vm1808 = vcmp.eq.s32.totalorder %v1066, 4
          %1810 = vset.pattern.permute.xlu0 0
          %1811 = vperm.xlu0 %1810, %v1668
          %v1812 = vpop.permute.xlu0 %1811
          %1815 = vset.pattern.permute.xlu0 0
          %1816 = vperm.xlu0 %1815, %v1669
          %v1817 = vpop.permute.xlu0 %1816
          %1820 = vset.pattern.permute.xlu0 0
          %1821 = vperm.xlu0 %1820, %v1670
          %v1822 = vpop.permute.xlu0 %1821
          %1825 = vset.pattern.permute.xlu0 0
          %1826 = vperm.xlu0 %1825, %v1671
          %v1827 = vpop.permute.xlu0 %1826
          %v1829 = vsel %vm1808, %v1812, %v1804
          %v1830 = vsel %vm1808, %v1817, %v1805
          %v1831 = vsel %vm1808, %v1822, %v1806
          %v1832 = vsel %vm1808, %v1827, %v1807
          %vm1833 = vcmask 64512
          %1834 = vst.msk [vmem:[%s296] sm:$0xff] %vm1833, %v1829
          %1835 = vst.msk [vmem:[%s296 + $0x8] sm:$0xff] %vm1833, %v1830
          %1836 = vst.msk [vmem:[%s296 + $0x10] sm:$0xff] %vm1833, %v1831
          %1837 = vst.msk [vmem:[%s296 + $0x18] sm:$0xff] %vm1833, %v1832
        $region48: #{multi_llama_forward.3} parent=35 // pred_fallthru
          _
        %s1838 = smul.u32 4, %s22
        %p1839 = scmp.lt.s32.totalorder %s1838, 3
        %s1840 = scalar_select %p1839, %s1838, 3
        %s1841 = smul.addr %s1840, 8
        %s1842 = scalar_lea.vmem %s4, %s1841
        // Predicated region
        $region49: #{multi_llama_forward.3} parent=35 // pred_check
          %p1843 = pneg %p152
        $region50: #{multi_llama_forward.3} parent=35 // pred_check_branch
          %1845 = sbr.rel (%p1843) target = $region52
        $region51: #{multi_llama_forward.3} parent=35 // pred_region
          %s1846 = smul.u32 4, %s22
        $region52: #{multi_llama_forward.3} parent=35 // pred_fallthru
          _
        // Predicated region
        $region53: #{multi_llama_forward.3} parent=35 // pred_check
          %p1847 = pneg %p152
        $region54: #{multi_llama_forward.3} parent=35 // pred_check_branch
          %1849 = sbr.rel (%p1847) target = $region56
        $region55: #{multi_llama_forward.3} parent=35 // pred_region
          %s1850 = smul.u32 4, %s22
          %p1851 = scmp.lt.s32.totalorder %s1850, 3
          %s1852 = scalar_select %p1851, %s1850, 3
          %s1853 = smul.addr %s1852, 8
          %s1854 = scalar_lea.vmem %s4, %s1853
        $region56: #{multi_llama_forward.3} parent=35 // pred_fallthru
          _
      $region36: #{multi_llama_forward.3} parent=5 // pred_fallthru
        _
      %p1855 = scmp.le.s32.totalorder 2, %s13
      // Predicated region
      $region57: #{multi_llama_forward.3} parent=5 // pred_check
        %p1856 = pneg %p1855
      $region58: #{multi_llama_forward.3} parent=5 // pred_check_branch
        %1858 = sbr.rel (%p1856) target = $region60
      $region59: #{multi_llama_forward.3} parent=5 // pred_region
        %s1859 = ssub.s32 %s13, 2
      $region60: #{multi_llama_forward.3} parent=5 // pred_fallthru
        _
    $region6: #{multi_llama_forward.3} parent=1 // loop_footer
      %s17 = sadd.s32 1, %s13
    $region7: #{multi_llama_forward.3} parent=1 // loop_footer_branch
      %12 = sbr.rel target = $region3
    $region8: #{multi_llama_forward.3} parent=1 // loop_exit
      _
    %1860 = vsyncpa [#allocation7], 1
    %s1861 = scalar_lea.sflag [#allocation7], 1
    %1862 = vsyncpa %s1861, 1

</llo_original>
